<compile_context>
chip_gen: v5e
topology: v5e:2x2
jax: 0.10.0
libtpu: 0.0.40
codegen_flags: <defaults>
</compile_context>

<pallas_src>
import functools

import jax
import jax.numpy as jnp
from jax.experimental import pallas as pl
from jax.experimental.pallas import tpu as pltpu

STATE_DIM = 3
HIDDEN = (16, 64, 64, 16, 1)
N_LAYERS = len(HIDDEN)


# --------------------------------------------------------------------------- #
# Kernel
# --------------------------------------------------------------------------- #
def mlp_kernel(x_ref, w0, b0, w1, b1, w2, b2, w3, b3, w4c, b4, o_ref, *, chunk):
    """Fused 5-layer MLP over one (STATE_DIM, TILE) batch tile.

    x_ref : (STATE_DIM, TILE) f32   batch on lanes
    w0    : (16, STATE_DIM)   f32   torch layout [out, in]
    w1/2/3: (out, in)               mm dtype (bf16 or f32), MXU layers
    w4c   : (16, 1)           f32   last-layer weight as a column
    b0    : (16, 1) f32, b1/b2: (64, 1) ep dtype, b3: (16, 1) f32, b4: (1, 1) f32
    o_ref : (1, TILE) f32
    """
    n_chunks = o_ref.shape[1] // chunk

    # ---- Hoisted once per grid step (tiny, resident weights/biases) ---------
    w0v, b0v = w0[...], b0[...]
    w1v, b1v = w1[...], b1[...]
    w2v, b2v = w2[...], b2[...]
    w3v, b3v = w3[...], b3[...]
    w4cv, b4v = w4c[...], b4[...]
    w0cols = [w0v[:, k:k + 1] for k in range(STATE_DIM)]      # (16, 1) each
    mm_dtype = w1v.dtype
    ep_zero = jnp.zeros((), b1v.dtype)

    def chunk_body(c, carry):
        off = pl.multiple_of(c * chunk, chunk)
        x_c = x_ref[:, pl.ds(off, chunk)]                     # (3, chunk) f32

        # ---- Layer 0 (3 -> 16): VPU broadcast-FMA, f32 ----------------------
        acc = w0cols[0] * x_c[0:1, :]
        for k in range(1, STATE_DIM):
            acc = acc + w0cols[k] * x_c[k:k + 1, :]
        h = jnp.maximum(acc + b0v, 0.0).astype(mm_dtype)      # (16, chunk)

        # ---- Layers 1-2 (16->64, 64->64): MXU, bias+ReLU epilogue in ep dtype
        for w, b in ((w1v, b1v), (w2v, b2v)):
            z = jnp.dot(w, h, preferred_element_type=jnp.float32)
            h = jnp.maximum(z.astype(b.dtype) + b, ep_zero).astype(mm_dtype)

        # ---- Layer 3 (64 -> 16): MXU, f32 epilogue (feeds final f32 layer) --
        z = jnp.dot(w3v, h, preferred_element_type=jnp.float32)
        h = jnp.maximum(z + b3v, 0.0)                         # (16, chunk) f32

        # ---- Layer 4 (16 -> 1): VPU multiply + sublane reduce ---------------
        out = jnp.sum(w4cv * h, axis=0, keepdims=True) + b4v  # (1, chunk) f32
        o_ref[:, pl.ds(off, chunk)] = out.astype(o_ref.dtype)
        return carry

    jax.lax.fori_loop(0, n_chunks, chunk_body, 0)


# --------------------------------------------------------------------------- #
# Parameter init (matches torch _initial_param: xavier_normal_, zero bias)
# --------------------------------------------------------------------------- #
def init_params(key):
    dims = (STATE_DIM,) + HIDDEN
    params = []
    for i in range(N_LAYERS):
        key, sub = jax.random.split(key)
        fan_in, fan_out = dims[i], dims[i + 1]
        std = (2.0 / (fan_in + fan_out)) ** 0.5
        w = jax.random.normal(sub, (fan_out, fan_in), jnp.float32) * std
        b = jnp.zeros((fan_out,), jnp.float32)
        params.append((w, b))
    return params


# --------------------------------------------------------------------------- #
# Wrapper
# --------------------------------------------------------------------------- #
def _round_up(n, m):
    return ((n + m - 1) // m) * m


def _vpu_has_native_bf16():
    """v6e / v7x VPUs are bf16-native; v5 and older are not."""
    try:
        kind = jax.devices()[0].device_kind.lower()
    except Exception:
        return True
    return not any(v in kind for v in ("v2", "v3", "v4", "v5"))


def _choose_tile(B, batch_tile, chunk):
    """Pick (grid tile, in-kernel chunk).

    tile is a multiple of 128 and of the returned chunk.  When B >= 256 the
    tile is capped at ~half the batch so the 'parallel' grid axis has >= 2
    steps (keeps both v7x TensorCores busy) without shrinking the tile more
    than necessary.
    """
    b128 = _round_up(B, 128)
    batch_tile = max(128, (batch_tile // 128) * 128)
    tile = min(batch_tile, b128)
    if b128 >= 256:
        tile = min(tile, _round_up((b128 + 1) // 2, 128))
    if tile >= chunk:
        return (tile // chunk) * chunk, chunk
    return tile, tile


def nonpara_forward(x, params, *, batch_tile=4096, chunk=512,
                    use_bf16=True, bf16_epilogue=None):
    """Forward pass of NonparaModel.  x: (B, STATE_DIM) -> (B, 1)."""
    B, sd = x.shape
    assert sd == STATE_DIM
    assert len(params) == N_LAYERS

    if not use_bf16:
        bf16_epilogue = False
        chunk = min(chunk, 256)          # halve the f32 live set (vreg safety)
    elif bf16_epilogue is None:
        bf16_epilogue = _vpu_has_native_bf16()

    mm_dtype = jnp.bfloat16 if use_bf16 else jnp.float32
    ep_dtype = jnp.bfloat16 if bf16_epilogue else jnp.float32

    chunk = max(128, (chunk // 128) * 128)
    tile, chunk_eff = _choose_tile(B, batch_tile, chunk)
    assert tile % chunk_eff == 0
    grid = -(-B // tile)                 # cdiv; ragged tail block is masked

    # (B, 3) -> (3, B): one cheap XLA transpose, no zero-padded materialization.
    x_t = x.T.astype(jnp.float32)

    (w0, b0), (w1, b1), (w2, b2), (w3, b3), (w4, b4) = params
    operands = [
        x_t,
        w0.astype(jnp.float32), b0.reshape(-1, 1).astype(jnp.float32),
        w1.astype(mm_dtype),    b1.reshape(-1, 1).astype(ep_dtype),
        w2.astype(mm_dtype),    b2.reshape(-1, 1).astype(ep_dtype),
        w3.astype(mm_dtype),    b3.reshape(-1, 1).astype(jnp.float32),
        w4.T.astype(jnp.float32), b4.reshape(1, 1).astype(jnp.float32),
    ]

    in_specs = [pl.BlockSpec((STATE_DIM, tile), lambda i: (0, i))]
    for op in operands[1:]:
        # Tiny weights/biases resident every step (constant (0,0) index map).
        in_specs.append(pl.BlockSpec(op.shape, lambda i: (0, 0)))
    out_spec = pl.BlockSpec((1, tile), lambda i: (0, i))

    out_t = pl.pallas_call(
        functools.partial(mlp_kernel, chunk=chunk_eff),
        out_shape=jax.ShapeDtypeStruct((1, B), jnp.float32),
        grid_spec=pltpu.PrefetchScalarGridSpec(
            num_scalar_prefetch=0,
            grid=(grid,),
            in_specs=in_specs,
            out_specs=out_spec,
        ),
        compiler_params=pltpu.CompilerParams(
            dimension_semantics=("parallel",),
        ),
    )(*operands)

    # (1, B) -> (B, 1) is a pure row-major reshape (free), not a transpose pass.
    return out_t.reshape(B, 1).astype(x.dtype)


# --------------------------------------------------------------------------- #
# References
# --------------------------------------------------------------------------- #
def reference_forward(x, params, *, use_bf16=True, bf16_epilogue=True):
    """Pure-JAX reference mirroring the kernel's precision choices."""
    mm = jnp.bfloat16 if use_bf16 else jnp.float32
    ep = jnp.bfloat16 if (use_bf16 and bf16_epilogue) else jnp.float32
    hi = jax.lax.Precision.HIGHEST
    (w0, b0), (w1, b1), (w2, b2), (w3, b3), (w4, b4) = params
    x32 = x.astype(jnp.float32)
    h = jnp.maximum(jnp.dot(x32, w0.T, precision=hi) + b0, 0.0).astype(mm)
    for w, b in ((w1, b1), (w2, b2)):
        z = jnp.dot(h, w.astype(mm).T, preferred_element_type=jnp.float32)
        h = jnp.maximum(z.astype(ep) + b.astype(ep), jnp.zeros((), ep)).astype(mm)
    z = jnp.dot(h, w3.astype(mm).T, preferred_element_type=jnp.float32)
    h = jnp.maximum(z + b3, 0.0)
    return (jnp.dot(h, w4.T, precision=hi) + b4).astype(x.dtype)


def reference_forward_f32(x, params):
    """Exact f32 reference matching the PyTorch module."""
    h = x.astype(jnp.float32)
    for i, (w, b) in enumerate(params):
        h = jnp.dot(h, w.T, precision=jax.lax.Precision.HIGHEST) + b
        if i < N_LAYERS - 1:
            h = jnp.maximum(h, 0.0)
    return h


# --------------------------------------------------------------------------- #
# Demo / self-test
# --------------------------------------------------------------------------- #
if __name__ == "__main__":
    key = jax.random.PRNGKey(0)
    k_param, k_x = jax.random.split(key)

    params = init_params(k_param)
    B = 2048                              # -> tile=1024, grid=2 (both v7x TCs),
    x = jax.random.normal(k_x, (B, STATE_DIM), jnp.float32)  # 2 chunks per step

    bf16_ep = _vpu_has_native_bf16()
    out = nonpara_forward(x, params, use_bf16=True, bf16_epilogue=bf16_ep)
    out = jax.block_until_ready(out)
    assert out.shape == (B, 1)

    ref = reference_forward(x, params, use_bf16=True, bf16_epilogue=bf16_ep)
    assert jnp.allclose(out, ref, atol=1e-2, rtol=1e-2), (
        f"mismatch vs precision-matched reference: "
        f"max abs diff {jnp.max(jnp.abs(out - ref))}")

    ref32 = reference_forward_f32(x, params)
    assert jnp.allclose(out, ref32, atol=5e-2, rtol=5e-2), (
        f"mismatch vs f32 reference: "
        f"max abs diff {jnp.max(jnp.abs(out - ref32))}")

    print("KERNEL_OK")
</pallas_src>

<mosaic_0001>
module attributes {stable_mosaic.version = 11 : i64} {
  func.func @mlp_kernel(%arg0: i32, %arg1: memref<3x1024xf32, #tpu.memory_space<vmem>>, %arg2: memref<16x3xf32, #tpu.memory_space<vmem>>, %arg3: memref<16x1xf32, #tpu.memory_space<vmem>>, %arg4: memref<64x16xbf16, #tpu.memory_space<vmem>>, %arg5: memref<64x1xbf16, #tpu.memory_space<vmem>>, %arg6: memref<64x64xbf16, #tpu.memory_space<vmem>>, %arg7: memref<64x1xbf16, #tpu.memory_space<vmem>>, %arg8: memref<16x64xbf16, #tpu.memory_space<vmem>>, %arg9: memref<16x1xf32, #tpu.memory_space<vmem>>, %arg10: memref<16x1xf32, #tpu.memory_space<vmem>>, %arg11: memref<1x1xf32, #tpu.memory_space<vmem>>, %arg12: memref<1x1024xf32, #tpu.memory_space<vmem>>) attributes {dimension_semantics = [#tpu.dimension_semantics<parallel>], iteration_bounds = array<i64: 2>, scalar_prefetch = 0 : i64, scratch_operands = 0 : i64, tpu.core_type = #tpu.core_type<tc>, window_params = [{transform_indices = @transform_0, window_bounds = array<i64: 3, 1024>}, {pipeline_mode = #tpu.pipeline_mode<synchronous>, transform_indices = @transform_1, window_bounds = array<i64: 16, 3>}, {pipeline_mode = #tpu.pipeline_mode<synchronous>, transform_indices = @transform_2, window_bounds = array<i64: 16, 1>}, {pipeline_mode = #tpu.pipeline_mode<synchronous>, transform_indices = @transform_3, window_bounds = array<i64: 64, 16>}, {pipeline_mode = #tpu.pipeline_mode<synchronous>, transform_indices = @transform_4, window_bounds = array<i64: 64, 1>}, {pipeline_mode = #tpu.pipeline_mode<synchronous>, transform_indices = @transform_5, window_bounds = array<i64: 64, 64>}, {pipeline_mode = #tpu.pipeline_mode<synchronous>, transform_indices = @transform_6, window_bounds = array<i64: 64, 1>}, {pipeline_mode = #tpu.pipeline_mode<synchronous>, transform_indices = @transform_7, window_bounds = array<i64: 16, 64>}, {pipeline_mode = #tpu.pipeline_mode<synchronous>, transform_indices = @transform_8, window_bounds = array<i64: 16, 1>}, {pipeline_mode = #tpu.pipeline_mode<synchronous>, transform_indices = @transform_9, window_bounds = array<i64: 16, 1>}, {pipeline_mode = #tpu.pipeline_mode<synchronous>, transform_indices = @transform_10, window_bounds = array<i64: 1, 1>}, {transform_indices = @transform_11, window_bounds = array<i64: 1, 1024>}]} {
    %c0 = arith.constant 0 : index
    %c0_0 = arith.constant 0 : index
    %0 = vector.load %arg2[%c0, %c0_0] : memref<16x3xf32, #tpu.memory_space<vmem>>, vector<16x3xf32>
    %c0_1 = arith.constant 0 : index
    %c0_2 = arith.constant 0 : index
    %1 = vector.load %arg3[%c0_1, %c0_2] : memref<16x1xf32, #tpu.memory_space<vmem>>, vector<16x1xf32>
    %c0_3 = arith.constant 0 : index
    %c0_4 = arith.constant 0 : index
    %2 = vector.load %arg4[%c0_3, %c0_4] : memref<64x16xbf16, #tpu.memory_space<vmem>>, vector<64x16xbf16>
    %c0_5 = arith.constant 0 : index
    %c0_6 = arith.constant 0 : index
    %3 = vector.load %arg5[%c0_5, %c0_6] : memref<64x1xbf16, #tpu.memory_space<vmem>>, vector<64x1xbf16>
    %c0_7 = arith.constant 0 : index
    %c0_8 = arith.constant 0 : index
    %4 = vector.load %arg6[%c0_7, %c0_8] : memref<64x64xbf16, #tpu.memory_space<vmem>>, vector<64x64xbf16>
    %c0_9 = arith.constant 0 : index
    %c0_10 = arith.constant 0 : index
    %5 = vector.load %arg7[%c0_9, %c0_10] : memref<64x1xbf16, #tpu.memory_space<vmem>>, vector<64x1xbf16>
    %c0_11 = arith.constant 0 : index
    %c0_12 = arith.constant 0 : index
    %6 = vector.load %arg8[%c0_11, %c0_12] : memref<16x64xbf16, #tpu.memory_space<vmem>>, vector<16x64xbf16>
    %c0_13 = arith.constant 0 : index
    %c0_14 = arith.constant 0 : index
    %7 = vector.load %arg9[%c0_13, %c0_14] : memref<16x1xf32, #tpu.memory_space<vmem>>, vector<16x1xf32>
    %c0_15 = arith.constant 0 : index
    %c0_16 = arith.constant 0 : index
    %8 = vector.load %arg10[%c0_15, %c0_16] : memref<16x1xf32, #tpu.memory_space<vmem>>, vector<16x1xf32>
    %c0_17 = arith.constant 0 : index
    %c0_18 = arith.constant 0 : index
    %9 = vector.load %arg11[%c0_17, %c0_18] : memref<1x1xf32, #tpu.memory_space<vmem>>, vector<1x1xf32>
    %10 = vector.extract_strided_slice %0 {offsets = [0, 0], sizes = [16, 1], strides = [1, 1]} : vector<16x3xf32> to vector<16x1xf32>
    %11 = vector.extract_strided_slice %0 {offsets = [0, 1], sizes = [16, 1], strides = [1, 1]} : vector<16x3xf32> to vector<16x1xf32>
    %12 = vector.extract_strided_slice %0 {offsets = [0, 2], sizes = [16, 1], strides = [1, 1]} : vector<16x3xf32> to vector<16x1xf32>
    %cst = arith.constant 0.000000e+00 : bf16
    %c0_i32 = arith.constant 0 : i32
    %c2_i32 = arith.constant 2 : i32
    %13 = arith.addi %c0_i32, %c2_i32 : i32
    %c1_i32 = arith.constant 1 : i32
    scf.for %arg13 = %c0_i32 to %13 step %c1_i32  : i32 {
      %c512_i32 = arith.constant 512 : i32
      %14 = arith.muli %arg13, %c512_i32 : i32
      %15 = tpu.assume_multiple %14, 512 : i32
      %c0_20 = arith.constant 0 : index
      %16 = arith.index_cast %15 : i32 to index
      %17 = vector.load %arg1[%c0_20, %16] : memref<3x1024xf32, #tpu.memory_space<vmem>>, vector<3x512xf32>
      %18 = vector.extract_strided_slice %17 {offsets = [0, 0], sizes = [1, 512], strides = [1, 1]} : vector<3x512xf32> to vector<1x512xf32>
      %19 = vector.broadcast %10 : vector<16x1xf32> to vector<16x512xf32>
      %20 = vector.broadcast %18 : vector<1x512xf32> to vector<16x512xf32>
      %21 = arith.mulf %19, %20 : vector<16x512xf32>
      %22 = vector.extract_strided_slice %17 {offsets = [1, 0], sizes = [1, 512], strides = [1, 1]} : vector<3x512xf32> to vector<1x512xf32>
      %23 = vector.broadcast %11 : vector<16x1xf32> to vector<16x512xf32>
      %24 = vector.broadcast %22 : vector<1x512xf32> to vector<16x512xf32>
      %25 = arith.mulf %23, %24 : vector<16x512xf32>
      %26 = arith.addf %21, %25 : vector<16x512xf32>
      %27 = vector.extract_strided_slice %17 {offsets = [2, 0], sizes = [1, 512], strides = [1, 1]} : vector<3x512xf32> to vector<1x512xf32>
      %28 = vector.broadcast %12 : vector<16x1xf32> to vector<16x512xf32>
      %29 = vector.broadcast %27 : vector<1x512xf32> to vector<16x512xf32>
      %30 = arith.mulf %28, %29 : vector<16x512xf32>
      %31 = arith.addf %26, %30 : vector<16x512xf32>
      %32 = vector.broadcast %1 : vector<16x1xf32> to vector<16x512xf32>
      %33 = arith.addf %31, %32 : vector<16x512xf32>
      %cst_21 = arith.constant 0.000000e+00 : f32
      %34 = vector.broadcast %cst_21 : f32 to vector<16x512xf32>
      %35 = arith.maximumf %33, %34 : vector<16x512xf32>
      %36 = arith.truncf %35 : vector<16x512xf32> to vector<16x512xbf16>
      %cst_22 = arith.constant dense<0.000000e+00> : vector<64x512xf32>
      %37 = tpu.matmul %2, %36, %cst_22 {dimension_numbers = #tpu.dot_dimension_numbers<[1], [0], [0], [1], [0, 0, 1, 1], [], []>} : vector<64x16xbf16>, vector<16x512xbf16>, vector<64x512xf32> -> vector<64x512xf32>
      %38 = arith.truncf %37 : vector<64x512xf32> to vector<64x512xbf16>
      %39 = vector.broadcast %3 : vector<64x1xbf16> to vector<64x512xbf16>
      %40 = arith.addf %38, %39 : vector<64x512xbf16>
      %41 = vector.broadcast %cst : bf16 to vector<64x512xbf16>
      %42 = arith.maximumf %40, %41 : vector<64x512xbf16>
      %cst_23 = arith.constant dense<0.000000e+00> : vector<64x512xf32>
      %43 = tpu.matmul %4, %42, %cst_23 {dimension_numbers = #tpu.dot_dimension_numbers<[1], [0], [0], [1], [0, 0, 1, 1], [], []>} : vector<64x64xbf16>, vector<64x512xbf16>, vector<64x512xf32> -> vector<64x512xf32>
      %44 = arith.truncf %43 : vector<64x512xf32> to vector<64x512xbf16>
      %45 = vector.broadcast %5 : vector<64x1xbf16> to vector<64x512xbf16>
      %46 = arith.addf %44, %45 : vector<64x512xbf16>
      %47 = vector.broadcast %cst : bf16 to vector<64x512xbf16>
      %48 = arith.maximumf %46, %47 : vector<64x512xbf16>
      %cst_24 = arith.constant dense<0.000000e+00> : vector<16x512xf32>
      %49 = tpu.matmul %6, %48, %cst_24 {dimension_numbers = #tpu.dot_dimension_numbers<[1], [0], [0], [1], [0, 0, 1, 1], [], []>} : vector<16x64xbf16>, vector<64x512xbf16>, vector<16x512xf32> -> vector<16x512xf32>
      %50 = vector.broadcast %7 : vector<16x1xf32> to vector<16x512xf32>
      %51 = arith.addf %49, %50 : vector<16x512xf32>
      %cst_25 = arith.constant 0.000000e+00 : f32
      %52 = vector.broadcast %cst_25 : f32 to vector<16x512xf32>
      %53 = arith.maximumf %51, %52 : vector<16x512xf32>
      %54 = vector.broadcast %8 : vector<16x1xf32> to vector<16x512xf32>
      %55 = arith.mulf %54, %53 : vector<16x512xf32>
      %cst_26 = arith.constant dense<0.000000e+00> : vector<512xf32>
      %56 = vector.multi_reduction <add>, %55, %cst_26 [0] : vector<16x512xf32> to vector<512xf32>
      %57 = vector.shape_cast %56 : vector<512xf32> to vector<1x512xf32>
      %58 = vector.broadcast %9 : vector<1x1xf32> to vector<1x512xf32>
      %59 = arith.addf %57, %58 : vector<1x512xf32>
      %c0_27 = arith.constant 0 : index
      %60 = arith.index_cast %15 : i32 to index
      %61 = vector.load %arg12[%c0_27, %60] : memref<1x1024xf32, #tpu.memory_space<vmem>>, vector<1x512xf32>
      tpu.vector_store %arg12[%c0_27, %60], %59 {strides = array<i32>} : memref<1x1024xf32, #tpu.memory_space<vmem>>, vector<1x512xf32>,
    }
    %c2_i32_19 = arith.constant 2 : i32
    return
  }
  func.func @transform_0(%arg0: i32) -> (i32, i32) {
    %c0_i32 = arith.constant 0 : i32
    %c0_i32_0 = arith.constant 0 : i32
    return %c0_i32, %arg0 : i32, i32
  }
  func.func @transform_1(%arg0: i32) -> (i32, i32) {
    %c0_i32 = arith.constant 0 : i32
    %c0_i32_0 = arith.constant 0 : i32
    %c0_i32_1 = arith.constant 0 : i32
    return %c0_i32, %c0_i32_0 : i32, i32
  }
  func.func @transform_2(%arg0: i32) -> (i32, i32) {
    %c0_i32 = arith.constant 0 : i32
    %c0_i32_0 = arith.constant 0 : i32
    %c0_i32_1 = arith.constant 0 : i32
    return %c0_i32, %c0_i32_0 : i32, i32
  }
  func.func @transform_3(%arg0: i32) -> (i32, i32) {
    %c0_i32 = arith.constant 0 : i32
    %c0_i32_0 = arith.constant 0 : i32
    %c0_i32_1 = arith.constant 0 : i32
    return %c0_i32, %c0_i32_0 : i32, i32
  }
  func.func @transform_4(%arg0: i32) -> (i32, i32) {
    %c0_i32 = arith.constant 0 : i32
    %c0_i32_0 = arith.constant 0 : i32
    %c0_i32_1 = arith.constant 0 : i32
    return %c0_i32, %c0_i32_0 : i32, i32
  }
  func.func @transform_5(%arg0: i32) -> (i32, i32) {
    %c0_i32 = arith.constant 0 : i32
    %c0_i32_0 = arith.constant 0 : i32
    %c0_i32_1 = arith.constant 0 : i32
    return %c0_i32, %c0_i32_0 : i32, i32
  }
  func.func @transform_6(%arg0: i32) -> (i32, i32) {
    %c0_i32 = arith.constant 0 : i32
    %c0_i32_0 = arith.constant 0 : i32
    %c0_i32_1 = arith.constant 0 : i32
    return %c0_i32, %c0_i32_0 : i32, i32
  }
  func.func @transform_7(%arg0: i32) -> (i32, i32) {
    %c0_i32 = arith.constant 0 : i32
    %c0_i32_0 = arith.constant 0 : i32
    %c0_i32_1 = arith.constant 0 : i32
    return %c0_i32, %c0_i32_0 : i32, i32
  }
  func.func @transform_8(%arg0: i32) -> (i32, i32) {
    %c0_i32 = arith.constant 0 : i32
    %c0_i32_0 = arith.constant 0 : i32
    %c0_i32_1 = arith.constant 0 : i32
    return %c0_i32, %c0_i32_0 : i32, i32
  }
  func.func @transform_9(%arg0: i32) -> (i32, i32) {
    %c0_i32 = arith.constant 0 : i32
    %c0_i32_0 = arith.constant 0 : i32
    %c0_i32_1 = arith.constant 0 : i32
    return %c0_i32, %c0_i32_0 : i32, i32
  }
  func.func @transform_10(%arg0: i32) -> (i32, i32) {
    %c0_i32 = arith.constant 0 : i32
    %c0_i32_0 = arith.constant 0 : i32
    %c0_i32_1 = arith.constant 0 : i32
    return %c0_i32, %c0_i32_0 : i32, i32
  }
  func.func @transform_11(%arg0: i32) -> (i32, i32) {
    %c0_i32 = arith.constant 0 : i32
    %c0_i32_0 = arith.constant 0 : i32
    return %c0_i32, %arg0 : i32, i32
  }
}

</mosaic_0001>

<llo_original>
// kernel: tpu_custom_call.1
$region0: #{tpu_custom_call.1}
  #allocation0 [shape = 'u32[]', space=smem, size = 0x4, offset = 0x4, fixed_abs, tag = 'smem constant byte address 0x4 - core index']
  #allocation1 [shape = 'u32[72,128]{1,0:T(1,128)}', space=vmem, size = 0x9000, scoped, tag = 'internal scratch']
  #allocation2 [shape = 'f32[1,1]{1,0:T(1,128)S(1)}', space=vmem, size = 0x200, scoped, tag = 'scoped memory for tpu_custom_call.1']
  %s0 = inlined_call_operand.vmem [shape: f32[3,2048], index: 0, kind: input, shape index: {}]
  %s1 = inlined_call_operand.vmem [shape: f32[16,3], index: 1, kind: input, shape index: {}]
  %s2 = inlined_call_operand.vmem [shape: f32[16,1], index: 2, kind: input, shape index: {}]
  %s3 = inlined_call_operand.vmem [shape: bf16[64,16], index: 3, kind: input, shape index: {}]
  %s4 = inlined_call_operand.vmem [shape: bf16[64,1], index: 4, kind: input, shape index: {}]
  %s5 = inlined_call_operand.vmem [shape: bf16[64,64], index: 5, kind: input, shape index: {}]
  %s6 = inlined_call_operand.vmem [shape: bf16[64,1], index: 6, kind: input, shape index: {}]
  %s7 = inlined_call_operand.vmem [shape: bf16[16,64], index: 7, kind: input, shape index: {}]
  %s8 = inlined_call_operand.vmem [shape: f32[16,1], index: 8, kind: input, shape index: {}]
  %s9 = inlined_call_operand.vmem [shape: f32[16,1], index: 9, kind: input, shape index: {}]
  %s10 = inlined_call_operand.<no memory space> [shape: f32[1,1], index: 10, kind: input, shape index: {}]
  %s11 = inlined_call_operand.hbm [shape: f32[1,2048], index: 11, kind: output, shape index: {}]
  %s12 = sld [smem:[#allocation0]]
  $region84: #{tpu_custom_call.1} parent=0
    _
  %s14 = ssub.s32 1, %s12
  %s15 = scalar_select 0, %s14, %s12
  %v16 = vstv %s10
  %17 = vst [vmem:[#allocation2] sm:$0x1] %v16
  $region1: #{tpu_custom_call.1} parent=0
    #allocation3 [shape = 'u8[8192]{0}', space=vmem, size = 0x2000, scoped, tag = 'output window, operand 0']
    #allocation4 [shape = 's32[2]{0}', space=sflag, size = 0x8, scoped, tag = 'scoped memory for tpu_custom_call.1']
    %18 = vsyncpa [#allocation4], 0
    %s19 = scalar_lea.sflag [#allocation4], 1
    %20 = vsyncpa %s19, 0
    loop: start=0, step=1, limit=4
    $region2: #{tpu_custom_call.1} parent=1 // loop_pre_header
      _
    $region3: #{tpu_custom_call.1} parent=1 // loop_header
      %s22 = sphi 0, %s26
      %p23 = scmp.ge.s32.totalorder %s22, 4
      %s32 = sphi 0, %s34
      %s35 = sphi 0, %s32
      %s36 = sphi 0, %s35
      %s52 = sphi 0, %s36
      %s56 = sphi 0, %s56
      %s58 = sphi 0, %s56
      %s59 = sphi 0, %s58
      %s73 = sphi 0, %s59
      %s77 = sphi 0, %s77
      %s79 = sphi 0, %s77
      %s80 = sphi 0, %s79
      %s94 = sphi 0, %s80
      %s98 = sphi 0, %s98
      %s100 = sphi 0, %s98
      %s101 = sphi 0, %s100
      %s115 = sphi 0, %s101
      %s119 = sphi 0, %s119
      %s121 = sphi 0, %s119
      %s122 = sphi 0, %s121
      %s136 = sphi 0, %s122
      %s140 = sphi 0, %s140
      %s142 = sphi 0, %s140
      %s143 = sphi 0, %s142
      %s157 = sphi 0, %s143
      %s161 = sphi 0, %s161
      %s163 = sphi 0, %s161
      %s164 = sphi 0, %s163
      %s178 = sphi 0, %s164
      %s182 = sphi 0, %s182
      %s184 = sphi 0, %s182
      %s185 = sphi 0, %s184
      %s199 = sphi 0, %s185
      %s203 = sphi 0, %s203
      %s205 = sphi 0, %s203
      %s206 = sphi 0, %s205
      %s220 = sphi 0, %s206
      %s224 = sphi 0, %s224
      %s226 = sphi 0, %s224
      %s227 = sphi 0, %s226
      %s241 = sphi 0, %s227
      %s245 = sphi 0, %s245
      %s247 = sphi 0, %s245
      %s248 = sphi 0, %s247
      %s262 = sphi 0, %s248
      %s268 = sphi 0, %s270
      %s271 = sphi 0, %s268
      %s272 = sphi 0, %s271
      %s288 = sphi 0, %s272
    $region4: #{tpu_custom_call.1} parent=1 // loop_header_branch
      %25 = sbr.rel (%p23) target = $region8
    $region5: #{tpu_custom_call.1} parent=1 // loop_body
      %s27 = ssub.s32 %s22, 1
      %s28 = ssub.s32 %s22, 2
      %s29 = sadd.s32 %s22, 1
      %s30 = ssub.s32 %s22, %s29
      %p31 = scmp.eq.s32.totalorder %s30, 0
      %s33 = sadd.s32 %s32, 1
      %s34 = scalar_select %p31, %s32, %s33
      %p37 = pneg %p31
      %p38 = scmp.eq.s32.totalorder %s22, 1
      %p39 = por %p37, %p38
      %p40 = scmp.ne.s32.totalorder %s32, %s35
      %p41 = scmp.eq.s32.totalorder %s22, 0
      %p42 = por %p40, %p41
      %p43 = scmp.ne.s32.totalorder %s32, %s35
      %p44 = scmp.eq.s32.totalorder %s27, 1
      %p45 = por %p43, %p44
      %p46 = scmp.ne.s32.totalorder %s35, %s36
      %p47 = scmp.eq.s32.totalorder %s27, 0
      %p48 = por %p46, %p47
      %p49 = scmp.ne.s32.totalorder %s35, %s36
      %p50 = scmp.eq.s32.totalorder %s28, 1
      %p51 = por %p49, %p50
      %p53 = scmp.ne.s32.totalorder %s36, %s52
      %p54 = scmp.eq.s32.totalorder %s28, 0
      %p55 = por %p53, %p54
      %s57 = sadd.s32 %s56, 1
      %p60 = scmp.eq.s32.totalorder %s22, 1
      %p61 = scmp.ne.s32.totalorder %s56, %s58
      %p62 = scmp.eq.s32.totalorder %s22, 0
      %p63 = por %p61, %p62
      %p64 = scmp.ne.s32.totalorder %s56, %s58
      %p65 = scmp.eq.s32.totalorder %s27, 1
      %p66 = por %p64, %p65
      %p67 = scmp.ne.s32.totalorder %s58, %s59
      %p68 = scmp.eq.s32.totalorder %s27, 0
      %p69 = por %p67, %p68
      %p70 = scmp.ne.s32.totalorder %s58, %s59
      %p71 = scmp.eq.s32.totalorder %s28, 1
      %p72 = por %p70, %p71
      %p74 = scmp.ne.s32.totalorder %s59, %s73
      %p75 = scmp.eq.s32.totalorder %s28, 0
      %p76 = por %p74, %p75
      %s78 = sadd.s32 %s77, 1
      %p81 = scmp.eq.s32.totalorder %s22, 1
      %p82 = scmp.ne.s32.totalorder %s77, %s79
      %p83 = scmp.eq.s32.totalorder %s22, 0
      %p84 = por %p82, %p83
      %p85 = scmp.ne.s32.totalorder %s77, %s79
      %p86 = scmp.eq.s32.totalorder %s27, 1
      %p87 = por %p85, %p86
      %p88 = scmp.ne.s32.totalorder %s79, %s80
      %p89 = scmp.eq.s32.totalorder %s27, 0
      %p90 = por %p88, %p89
      %p91 = scmp.ne.s32.totalorder %s79, %s80
      %p92 = scmp.eq.s32.totalorder %s28, 1
      %p93 = por %p91, %p92
      %p95 = scmp.ne.s32.totalorder %s80, %s94
      %p96 = scmp.eq.s32.totalorder %s28, 0
      %p97 = por %p95, %p96
      %s99 = sadd.s32 %s98, 1
      %p102 = scmp.eq.s32.totalorder %s22, 1
      %p103 = scmp.ne.s32.totalorder %s98, %s100
      %p104 = scmp.eq.s32.totalorder %s22, 0
      %p105 = por %p103, %p104
      %p106 = scmp.ne.s32.totalorder %s98, %s100
      %p107 = scmp.eq.s32.totalorder %s27, 1
      %p108 = por %p106, %p107
      %p109 = scmp.ne.s32.totalorder %s100, %s101
      %p110 = scmp.eq.s32.totalorder %s27, 0
      %p111 = por %p109, %p110
      %p112 = scmp.ne.s32.totalorder %s100, %s101
      %p113 = scmp.eq.s32.totalorder %s28, 1
      %p114 = por %p112, %p113
      %p116 = scmp.ne.s32.totalorder %s101, %s115
      %p117 = scmp.eq.s32.totalorder %s28, 0
      %p118 = por %p116, %p117
      %s120 = sadd.s32 %s119, 1
      %p123 = scmp.eq.s32.totalorder %s22, 1
      %p124 = scmp.ne.s32.totalorder %s119, %s121
      %p125 = scmp.eq.s32.totalorder %s22, 0
      %p126 = por %p124, %p125
      %p127 = scmp.ne.s32.totalorder %s119, %s121
      %p128 = scmp.eq.s32.totalorder %s27, 1
      %p129 = por %p127, %p128
      %p130 = scmp.ne.s32.totalorder %s121, %s122
      %p131 = scmp.eq.s32.totalorder %s27, 0
      %p132 = por %p130, %p131
      %p133 = scmp.ne.s32.totalorder %s121, %s122
      %p134 = scmp.eq.s32.totalorder %s28, 1
      %p135 = por %p133, %p134
      %p137 = scmp.ne.s32.totalorder %s122, %s136
      %p138 = scmp.eq.s32.totalorder %s28, 0
      %p139 = por %p137, %p138
      %s141 = sadd.s32 %s140, 1
      %p144 = scmp.eq.s32.totalorder %s22, 1
      %p145 = scmp.ne.s32.totalorder %s140, %s142
      %p146 = scmp.eq.s32.totalorder %s22, 0
      %p147 = por %p145, %p146
      %p148 = scmp.ne.s32.totalorder %s140, %s142
      %p149 = scmp.eq.s32.totalorder %s27, 1
      %p150 = por %p148, %p149
      %p151 = scmp.ne.s32.totalorder %s142, %s143
      %p152 = scmp.eq.s32.totalorder %s27, 0
      %p153 = por %p151, %p152
      %p154 = scmp.ne.s32.totalorder %s142, %s143
      %p155 = scmp.eq.s32.totalorder %s28, 1
      %p156 = por %p154, %p155
      %p158 = scmp.ne.s32.totalorder %s143, %s157
      %p159 = scmp.eq.s32.totalorder %s28, 0
      %p160 = por %p158, %p159
      %s162 = sadd.s32 %s161, 1
      %p165 = scmp.eq.s32.totalorder %s22, 1
      %p166 = scmp.ne.s32.totalorder %s161, %s163
      %p167 = scmp.eq.s32.totalorder %s22, 0
      %p168 = por %p166, %p167
      %p169 = scmp.ne.s32.totalorder %s161, %s163
      %p170 = scmp.eq.s32.totalorder %s27, 1
      %p171 = por %p169, %p170
      %p172 = scmp.ne.s32.totalorder %s163, %s164
      %p173 = scmp.eq.s32.totalorder %s27, 0
      %p174 = por %p172, %p173
      %p175 = scmp.ne.s32.totalorder %s163, %s164
      %p176 = scmp.eq.s32.totalorder %s28, 1
      %p177 = por %p175, %p176
      %p179 = scmp.ne.s32.totalorder %s164, %s178
      %p180 = scmp.eq.s32.totalorder %s28, 0
      %p181 = por %p179, %p180
      %s183 = sadd.s32 %s182, 1
      %p186 = scmp.eq.s32.totalorder %s22, 1
      %p187 = scmp.ne.s32.totalorder %s182, %s184
      %p188 = scmp.eq.s32.totalorder %s22, 0
      %p189 = por %p187, %p188
      %p190 = scmp.ne.s32.totalorder %s182, %s184
      %p191 = scmp.eq.s32.totalorder %s27, 1
      %p192 = por %p190, %p191
      %p193 = scmp.ne.s32.totalorder %s184, %s185
      %p194 = scmp.eq.s32.totalorder %s27, 0
      %p195 = por %p193, %p194
      %p196 = scmp.ne.s32.totalorder %s184, %s185
      %p197 = scmp.eq.s32.totalorder %s28, 1
      %p198 = por %p196, %p197
      %p200 = scmp.ne.s32.totalorder %s185, %s199
      %p201 = scmp.eq.s32.totalorder %s28, 0
      %p202 = por %p200, %p201
      %s204 = sadd.s32 %s203, 1
      %p207 = scmp.eq.s32.totalorder %s22, 1
      %p208 = scmp.ne.s32.totalorder %s203, %s205
      %p209 = scmp.eq.s32.totalorder %s22, 0
      %p210 = por %p208, %p209
      %p211 = scmp.ne.s32.totalorder %s203, %s205
      %p212 = scmp.eq.s32.totalorder %s27, 1
      %p213 = por %p211, %p212
      %p214 = scmp.ne.s32.totalorder %s205, %s206
      %p215 = scmp.eq.s32.totalorder %s27, 0
      %p216 = por %p214, %p215
      %p217 = scmp.ne.s32.totalorder %s205, %s206
      %p218 = scmp.eq.s32.totalorder %s28, 1
      %p219 = por %p217, %p218
      %p221 = scmp.ne.s32.totalorder %s206, %s220
      %p222 = scmp.eq.s32.totalorder %s28, 0
      %p223 = por %p221, %p222
      %s225 = sadd.s32 %s224, 1
      %p228 = scmp.eq.s32.totalorder %s22, 1
      %p229 = scmp.ne.s32.totalorder %s224, %s226
      %p230 = scmp.eq.s32.totalorder %s22, 0
      %p231 = por %p229, %p230
      %p232 = scmp.ne.s32.totalorder %s224, %s226
      %p233 = scmp.eq.s32.totalorder %s27, 1
      %p234 = por %p232, %p233
      %p235 = scmp.ne.s32.totalorder %s226, %s227
      %p236 = scmp.eq.s32.totalorder %s27, 0
      %p237 = por %p235, %p236
      %p238 = scmp.ne.s32.totalorder %s226, %s227
      %p239 = scmp.eq.s32.totalorder %s28, 1
      %p240 = por %p238, %p239
      %p242 = scmp.ne.s32.totalorder %s227, %s241
      %p243 = scmp.eq.s32.totalorder %s28, 0
      %p244 = por %p242, %p243
      %s246 = sadd.s32 %s245, 1
      %p249 = scmp.eq.s32.totalorder %s22, 1
      %p250 = scmp.ne.s32.totalorder %s245, %s247
      %p251 = scmp.eq.s32.totalorder %s22, 0
      %p252 = por %p250, %p251
      %p253 = scmp.ne.s32.totalorder %s245, %s247
      %p254 = scmp.eq.s32.totalorder %s27, 1
      %p255 = por %p253, %p254
      %p256 = scmp.ne.s32.totalorder %s247, %s248
      %p257 = scmp.eq.s32.totalorder %s27, 0
      %p258 = por %p256, %p257
      %p259 = scmp.ne.s32.totalorder %s247, %s248
      %p260 = scmp.eq.s32.totalorder %s28, 1
      %p261 = por %p259, %p260
      %p263 = scmp.ne.s32.totalorder %s248, %s262
      %p264 = scmp.eq.s32.totalorder %s28, 0
      %p265 = por %p263, %p264
      %s266 = ssub.s32 %s22, %s29
      %p267 = scmp.eq.s32.totalorder %s266, 0
      %s269 = sadd.s32 %s268, 1
      %s270 = scalar_select %p267, %s268, %s269
      %p273 = pneg %p267
      %p274 = scmp.eq.s32.totalorder %s22, 1
      %p275 = por %p273, %p274
      %p276 = scmp.ne.s32.totalorder %s268, %s271
      %p277 = scmp.eq.s32.totalorder %s22, 0
      %p278 = por %p276, %p277
      %p279 = scmp.ne.s32.totalorder %s268, %s271
      %p280 = scmp.eq.s32.totalorder %s27, 1
      %p281 = por %p279, %p280
      %p282 = scmp.ne.s32.totalorder %s271, %s272
      %p283 = scmp.eq.s32.totalorder %s27, 0
      %p284 = por %p282, %p283
      %p285 = scmp.ne.s32.totalorder %s271, %s272
      %p286 = scmp.eq.s32.totalorder %s28, 1
      %p287 = por %p285, %p286
      %p289 = scmp.ne.s32.totalorder %s272, %s288
      %p290 = scmp.eq.s32.totalorder %s28, 0
      %p291 = por %p289, %p290
      %p292 = scmp.le.s32.totalorder 1, %s22
      %p293 = scmp.lt.s32.totalorder %s22, 3
      %p294 = pnand %p292, %p293
      %p295 = pneg %p294
      // Predicated region
      $region9: #{tpu_custom_call.1} parent=5 // pred_check
        _
      $region10: #{tpu_custom_call.1} parent=5 // pred_check_branch
        %297 = sbr.rel (%p294) target = $region12
      $region11: #{tpu_custom_call.1} parent=5 // pred_region
        %s298 = ssub.s32 %s22, 1
        // Predicated region
        $region13: #{tpu_custom_call.1} parent=11 // pred_check
          %p299 = pneg %p69
        $region14: #{tpu_custom_call.1} parent=11 // pred_check_branch
          %301 = sbr.rel (%p299) target = $region16
        $region15: #{tpu_custom_call.1} parent=11 // pred_region
          _
        $region16: #{tpu_custom_call.1} parent=11 // pred_fallthru
          _
        // Predicated region
        $region17: #{tpu_custom_call.1} parent=11 // pred_check
          %p302 = pneg %p90
        $region18: #{tpu_custom_call.1} parent=11 // pred_check_branch
          %304 = sbr.rel (%p302) target = $region20
        $region19: #{tpu_custom_call.1} parent=11 // pred_region
          _
        $region20: #{tpu_custom_call.1} parent=11 // pred_fallthru
          _
        // Predicated region
        $region21: #{tpu_custom_call.1} parent=11 // pred_check
          %p305 = pneg %p111
        $region22: #{tpu_custom_call.1} parent=11 // pred_check_branch
          %307 = sbr.rel (%p305) target = $region24
        $region23: #{tpu_custom_call.1} parent=11 // pred_region
          _
        $region24: #{tpu_custom_call.1} parent=11 // pred_fallthru
          _
        // Predicated region
        $region25: #{tpu_custom_call.1} parent=11 // pred_check
          %p308 = pneg %p132
        $region26: #{tpu_custom_call.1} parent=11 // pred_check_branch
          %310 = sbr.rel (%p308) target = $region28
        $region27: #{tpu_custom_call.1} parent=11 // pred_region
          _
        $region28: #{tpu_custom_call.1} parent=11 // pred_fallthru
          _
        // Predicated region
        $region29: #{tpu_custom_call.1} parent=11 // pred_check
          %p311 = pneg %p153
        $region30: #{tpu_custom_call.1} parent=11 // pred_check_branch
          %313 = sbr.rel (%p311) target = $region32
        $region31: #{tpu_custom_call.1} parent=11 // pred_region
          _
        $region32: #{tpu_custom_call.1} parent=11 // pred_fallthru
          _
        // Predicated region
        $region33: #{tpu_custom_call.1} parent=11 // pred_check
          %p314 = pneg %p174
        $region34: #{tpu_custom_call.1} parent=11 // pred_check_branch
          %316 = sbr.rel (%p314) target = $region36
        $region35: #{tpu_custom_call.1} parent=11 // pred_region
          _
        $region36: #{tpu_custom_call.1} parent=11 // pred_fallthru
          _
        // Predicated region
        $region37: #{tpu_custom_call.1} parent=11 // pred_check
          %p317 = pneg %p195
        $region38: #{tpu_custom_call.1} parent=11 // pred_check_branch
          %319 = sbr.rel (%p317) target = $region40
        $region39: #{tpu_custom_call.1} parent=11 // pred_region
          _
        $region40: #{tpu_custom_call.1} parent=11 // pred_fallthru
          _
        // Predicated region
        $region41: #{tpu_custom_call.1} parent=11 // pred_check
          %p320 = pneg %p216
        $region42: #{tpu_custom_call.1} parent=11 // pred_check_branch
          %322 = sbr.rel (%p320) target = $region44
        $region43: #{tpu_custom_call.1} parent=11 // pred_region
          _
        $region44: #{tpu_custom_call.1} parent=11 // pred_fallthru
          _
        // Predicated region
        $region45: #{tpu_custom_call.1} parent=11 // pred_check
          %p323 = pneg %p237
        $region46: #{tpu_custom_call.1} parent=11 // pred_check_branch
          %325 = sbr.rel (%p323) target = $region48
        $region47: #{tpu_custom_call.1} parent=11 // pred_region
          _
        $region48: #{tpu_custom_call.1} parent=11 // pred_fallthru
          _
        // Predicated region
        $region49: #{tpu_custom_call.1} parent=11 // pred_check
          %p326 = pneg %p258
        $region50: #{tpu_custom_call.1} parent=11 // pred_check_branch
          %328 = sbr.rel (%p326) target = $region52
        $region51: #{tpu_custom_call.1} parent=11 // pred_region
          _
        $region52: #{tpu_custom_call.1} parent=11 // pred_fallthru
          _
      $region12: #{tpu_custom_call.1} parent=5 // pred_fallthru
        _
      %p329 = scmp.lt.s32.totalorder %s22, 2
      // Predicated region
      $region53: #{tpu_custom_call.1} parent=5 // pred_check
        %p330 = pneg %p329
      $region54: #{tpu_custom_call.1} parent=5 // pred_check_branch
        %332 = sbr.rel (%p330) target = $region56
      $region55: #{tpu_custom_call.1} parent=5 // pred_region
        // Predicated region
        $region57: #{tpu_custom_call.1} parent=55 // pred_check
          %p333 = pneg %p42
        $region58: #{tpu_custom_call.1} parent=55 // pred_check_branch
          %335 = sbr.rel (%p333) target = $region60
        $region59: #{tpu_custom_call.1} parent=55 // pred_region
          %s336 = smul.u32 8, %s22
          %p337 = scmp.lt.s32.totalorder %s336, 15
          %s338 = scalar_select %p337, %s336, 15
          %s339 = smul.addr %s338, 4
          %s340 = scalar_lea.vmem %s0, %s339
          %s341 = smul.u32 8, %s22
        $region60: #{tpu_custom_call.1} parent=55 // pred_fallthru
          _
      $region56: #{tpu_custom_call.1} parent=5 // pred_fallthru
        _
      %p342 = scmp.le.s32.totalorder 1, %s22
      %p343 = scmp.lt.s32.totalorder %s22, 3
      %p344 = pnand %p342, %p343
      %p345 = pneg %p344
      // Predicated region
      $region61: #{tpu_custom_call.1} parent=5 // pred_check
        _
      $region62: #{tpu_custom_call.1} parent=5 // pred_check_branch
        %347 = sbr.rel (%p344) target = $region64
      $region63: #{tpu_custom_call.1} parent=5 // pred_region
        %s348 = ssub.s32 %s22, 1
        %s349 = smul.u32 8, %s27
        %p350 = scmp.lt.s32.totalorder %s349, 15
        %s351 = scalar_select %p350, %s349, 15
        %s352 = smul.addr %s351, 4
        %s353 = scalar_lea.vmem %s0, %s352
        %p354 = pneg %p48
        %p355 = pneg %p45
        %p356 = pneg %p69
        %p357 = pneg %p66
        %p358 = pneg %p90
        %p359 = pneg %p87
        %p360 = pneg %p111
        %p361 = pneg %p108
        %p362 = pneg %p132
        %p363 = pneg %p129
        %p364 = pneg %p153
        %p365 = pneg %p150
        %p366 = pneg %p174
        %p367 = pneg %p171
        %p368 = pneg %p195
        %p369 = pneg %p192
        %p370 = pneg %p216
        %p371 = pneg %p213
        %p372 = pneg %p237
        %p373 = pneg %p234
        %p374 = pneg %p258
        %p375 = pneg %p255
        %p376 = pneg %p284
        %p377 = pneg %p281
        %s378 = sand.u32 %s271, 1
        %s379 = scalar_lea.sflag [#allocation4], %s378
        %s380 = sand.u32 %s271, 1
        %s381 = smul.addr %s380, 8
        %s382 = scalar_lea.vmem [#allocation3], %s381
        %s383 = smul.u32 8, %s27
        %p384 = scmp.lt.s32.totalorder %s383, 15
        %s385 = scalar_select %p384, %s383, 15
        %s386 = smul.addr %s385, 4
        %s387 = scalar_lea.vmem %s0, %s386
        %s388 = smul.u32 8, %s27
        %s389 = smul.u32 8, %s27
        %v391 = vld [vmem:[%s1] sm:$0xff]
        %v392 = vld [vmem:[%s1 + $0x8] sm:$0xff]
        %v393 = vld [vmem:[%s2] sm:$0xff]
        %v394 = vld [vmem:[%s2 + $0x8] sm:$0xff]
        %v395 = vld [vmem:[%s3] sm:$0xf]
        %v396 = vld [vmem:[%s3 + $0x4] sm:$0xf]
        %v397 = vld [vmem:[%s3 + $0x8] sm:$0xf]
        %v398 = vld [vmem:[%s3 + $0xc] sm:$0xf]
        %v399 = vld [vmem:[%s3 + $0x10] sm:$0xf]
        %v400 = vld [vmem:[%s3 + $0x14] sm:$0xf]
        %v401 = vld [vmem:[%s3 + $0x18] sm:$0xf]
        %v402 = vld [vmem:[%s3 + $0x1c] sm:$0xf]
        %v403 = vld [vmem:[%s4] sm:$0xf]
        %v404 = vld [vmem:[%s4 + $0x4] sm:$0xf]
        %v405 = vld [vmem:[%s4 + $0x8] sm:$0xf]
        %v406 = vld [vmem:[%s4 + $0xc] sm:$0xf]
        %v407 = vld [vmem:[%s4 + $0x10] sm:$0xf]
        %v408 = vld [vmem:[%s4 + $0x14] sm:$0xf]
        %v409 = vld [vmem:[%s4 + $0x18] sm:$0xf]
        %v410 = vld [vmem:[%s4 + $0x1c] sm:$0xf]
        %v411 = vld [vmem:[%s5] sm:$0xf]
        %v412 = vld [vmem:[%s5 + $0x4] sm:$0xf]
        %v413 = vld [vmem:[%s5 + $0x8] sm:$0xf]
        %v414 = vld [vmem:[%s5 + $0xc] sm:$0xf]
        %v415 = vld [vmem:[%s5 + $0x10] sm:$0xf]
        %v416 = vld [vmem:[%s5 + $0x14] sm:$0xf]
        %v417 = vld [vmem:[%s5 + $0x18] sm:$0xf]
        %v418 = vld [vmem:[%s5 + $0x1c] sm:$0xf]
        %v419 = vld [vmem:[%s6] sm:$0xf]
        %v420 = vld [vmem:[%s6 + $0x4] sm:$0xf]
        %v421 = vld [vmem:[%s6 + $0x8] sm:$0xf]
        %v422 = vld [vmem:[%s6 + $0xc] sm:$0xf]
        %v423 = vld [vmem:[%s6 + $0x10] sm:$0xf]
        %v424 = vld [vmem:[%s6 + $0x14] sm:$0xf]
        %v425 = vld [vmem:[%s6 + $0x18] sm:$0xf]
        %v426 = vld [vmem:[%s6 + $0x1c] sm:$0xf]
        %v427 = vld [vmem:[%s7] sm:$0xf]
        %v428 = vld [vmem:[%s7 + $0x4] sm:$0xf]
        %v429 = vld [vmem:[%s8] sm:$0xff]
        %v430 = vld [vmem:[%s8 + $0x8] sm:$0xff]
        %v431 = vld [vmem:[%s9] sm:$0xff]
        %v432 = vld [vmem:[%s9 + $0x8] sm:$0xff]
        %v433 = vld [vmem:[#allocation2] sm:$0x1]
        loop: start=0, step=1, limit=2
        $region65: #{tpu_custom_call.1} parent=63 // loop_pre_header
          _
        $region66: #{tpu_custom_call.1} parent=63 // loop_header
          %s435 = sphi 0, %s439
          %p436 = scmp.ge.s32.totalorder %s435, 2
        $region67: #{tpu_custom_call.1} parent=63 // loop_header_branch
          %438 = sbr.rel (%p436) target = $region71
        $region68: #{tpu_custom_call.1} parent=63 // loop_body
          %s440 = smul.u32 %s435, 512
          %s441 = sshra.s32 %s440, 7
          %s442 = sand.u32 %s440, 127
          %s443 = smul.addr %s441, 4
          %s444 = scalar_lea.vmem %s387, %s443
          %v445 = vld [vmem:[%s444] sm:$0x77]
          %v446 = vld [vmem:[%s444 + $0x8] sm:$0x77]
          %448 = vset.pattern.permute.xlu0 0
          %449 = vperm.xlu0 %448, %v391
          %v450 = vpop.permute.xlu0 %449
          %453 = vset.pattern.permute.xlu0 0
          %454 = vperm.xlu0 %453, %v392
          %v455 = vpop.permute.xlu0 %454
          %v459 = vperm.slane %v445, 0
          %v460 = vperm.slane %v445, 4
          %v461 = vperm.slane %v446, 0
          %v462 = vperm.slane %v446, 4
          %v467 = vperm.slane %v459, 0
          %v468 = vperm.slane %v460, 0
          %v469 = vperm.slane %v461, 0
          %v470 = vperm.slane %v462, 0
          %v471 = vmul.f32 %v450, %v467
          %v472 = vmul.f32 %v450, %v468
          %v473 = vmul.f32 %v450, %v469
          %v474 = vmul.f32 %v450, %v470
          %v475 = vmul.f32 %v455, %v467
          %v476 = vmul.f32 %v455, %v468
          %v477 = vmul.f32 %v455, %v469
          %v478 = vmul.f32 %v455, %v470
          %479 = vset.pattern.permute.xlu0 1
          %480 = vperm.xlu0 %479, %v391
          %v481 = vpop.permute.xlu0 %480
          %483 = vset.pattern.permute.xlu0 1
          %484 = vperm.xlu0 %483, %v392
          %v485 = vpop.permute.xlu0 %484
          %v487 = vperm.slane %v445, 1
          %v488 = vperm.slane %v445, 5
          %v489 = vperm.slane %v446, 1
          %v490 = vperm.slane %v446, 5
          %v495 = vperm.slane %v487, 1
          %v496 = vperm.slane %v488, 1
          %v497 = vperm.slane %v489, 1
          %v498 = vperm.slane %v490, 1
          %v499 = vmul.f32 %v481, %v495
          %v500 = vmul.f32 %v481, %v496
          %v501 = vmul.f32 %v481, %v497
          %v502 = vmul.f32 %v481, %v498
          %v503 = vmul.f32 %v485, %v495
          %v504 = vmul.f32 %v485, %v496
          %v505 = vmul.f32 %v485, %v497
          %v506 = vmul.f32 %v485, %v498
          %v507 = vadd.f32 %v471, %v499
          %v508 = vadd.f32 %v472, %v500
          %v509 = vadd.f32 %v473, %v501
          %v510 = vadd.f32 %v474, %v502
          %v511 = vadd.f32 %v475, %v503
          %v512 = vadd.f32 %v476, %v504
          %v513 = vadd.f32 %v477, %v505
          %v514 = vadd.f32 %v478, %v506
          %515 = vset.pattern.permute.xlu0 2
          %516 = vperm.xlu0 %515, %v391
          %v517 = vpop.permute.xlu0 %516
          %519 = vset.pattern.permute.xlu0 2
          %520 = vperm.xlu0 %519, %v392
          %v521 = vpop.permute.xlu0 %520
          %v523 = vperm.slane %v445, 2
          %v524 = vperm.slane %v445, 6
          %v525 = vperm.slane %v446, 2
          %v526 = vperm.slane %v446, 6
          %v531 = vperm.slane %v523, 2
          %v532 = vperm.slane %v524, 2
          %v533 = vperm.slane %v525, 2
          %v534 = vperm.slane %v526, 2
          %v535 = vmul.f32 %v517, %v531
          %v536 = vmul.f32 %v517, %v532
          %v537 = vmul.f32 %v517, %v533
          %v538 = vmul.f32 %v517, %v534
          %v539 = vmul.f32 %v521, %v531
          %v540 = vmul.f32 %v521, %v532
          %v541 = vmul.f32 %v521, %v533
          %v542 = vmul.f32 %v521, %v534
          %v543 = vadd.f32 %v507, %v535
          %v544 = vadd.f32 %v508, %v536
          %v545 = vadd.f32 %v509, %v537
          %v546 = vadd.f32 %v510, %v538
          %v547 = vadd.f32 %v511, %v539
          %v548 = vadd.f32 %v512, %v540
          %v549 = vadd.f32 %v513, %v541
          %v550 = vadd.f32 %v514, %v542
          %552 = vset.pattern.permute.xlu0 0
          %553 = vperm.xlu0 %552, %v393
          %v554 = vpop.permute.xlu0 %553
          %557 = vset.pattern.permute.xlu0 0
          %558 = vperm.xlu0 %557, %v394
          %v559 = vpop.permute.xlu0 %558
          %v561 = vadd.f32 %v543, %v554
          %v562 = vadd.f32 %v544, %v554
          %v563 = vadd.f32 %v545, %v554
          %v564 = vadd.f32 %v546, %v554
          %v565 = vadd.f32 %v547, %v559
          %v566 = vadd.f32 %v548, %v559
          %v567 = vadd.f32 %v549, %v559
          %v568 = vadd.f32 %v550, %v559
          %v569 = vmax.f32 %v561, 0.0
          %v570 = vmax.f32 %v562, 0.0
          %v571 = vmax.f32 %v563, 0.0
          %v572 = vmax.f32 %v564, 0.0
          %v573 = vmax.f32 %v565, 0.0
          %v574 = vmax.f32 %v566, 0.0
          %v575 = vmax.f32 %v567, 0.0
          %v576 = vmax.f32 %v568, 0.0
          %v577 = vpack.c.bf16 %v573, %v569
          %v578 = vpack.c.bf16 %v574, %v570
          %v579 = vpack.c.bf16 %v575, %v571
          %v580 = vpack.c.bf16 %v576, %v572
          %v589 = vunpack.c.l.b16 %v395
          %v590 = vunpack.c.l.b16 %v396
          %v591 = vunpack.c.l.b16 %v397
          %v592 = vunpack.c.l.b16 %v398
          %v593 = vunpack.c.l.b16 %v399
          %v594 = vunpack.c.l.b16 %v400
          %v595 = vunpack.c.l.b16 %v401
          %v596 = vunpack.c.l.b16 %v402
          %v597 = vpack.c.b16 %v590, %v589
          %v598 = vpack.c.b16 %v592, %v591
          %v599 = vpack.c.b16 %v594, %v593
          %v600 = vpack.c.b16 %v596, %v595
          %vm601 = vcmask 130048
          %v603 = vsel %vm601, %v597, 0
          %v606 = vsel %vm601, %v598, 0
          %v609 = vsel %vm601, %v599, 0
          %v612 = vsel %vm601, %v600, 0
          %614 = vmatpush.bf16.msra.mxu0 0
          %615 = vmatpush.bf16.msra.mxu0 0
          %616 = vmatpush.bf16.msra.mxu0 0
          %617 = vmatpush.bf16.msra.mxu0 0
          %618 = vmatpush.bf16.msra.mxu0 0
          %619 = vmatpush.bf16.msra.mxu0 0
          %620 = vmatpush.bf16.msra.mxu0 0
          %621 = vmatpush.bf16.msra.mxu0 %v577
          %622 = vmatmul.bf16.gmra.mxu0 %v603
          %v623 = vpop.f32.mrf.mxu0
          %v624 = vadd.f32 0.0, %v623
          %v625 = vpop.f32.mrf.mxu0
          %v626 = vadd.f32 0.0, %v625
          %627 = vmatmul.bf16.gmra.mxu0 %v606
          %v628 = vpop.f32.mrf.mxu0
          %v629 = vadd.f32 0.0, %v628
          %v630 = vpop.f32.mrf.mxu0
          %v631 = vadd.f32 0.0, %v630
          %632 = vmatmul.bf16.gmra.mxu0 %v609
          %v633 = vpop.f32.mrf.mxu0
          %v634 = vadd.f32 0.0, %v633
          %v635 = vpop.f32.mrf.mxu0
          %v636 = vadd.f32 0.0, %v635
          %637 = vmatmul.bf16.gmra.mxu0 %v612
          %v638 = vpop.f32.mrf.mxu0
          %v639 = vadd.f32 0.0, %v638
          %v640 = vpop.f32.mrf.mxu0
          %v641 = vadd.f32 0.0, %v640
          %642 = vdwg.mxu0
          %643 = vmatpush.bf16.msra.mxu0 0
          %644 = vmatpush.bf16.msra.mxu0 0
          %645 = vmatpush.bf16.msra.mxu0 0
          %646 = vmatpush.bf16.msra.mxu0 0
          %647 = vmatpush.bf16.msra.mxu0 0
          %648 = vmatpush.bf16.msra.mxu0 0
          %649 = vmatpush.bf16.msra.mxu0 0
          %650 = vmatpush.bf16.msra.mxu0 %v578
          %651 = vmatmul.bf16.gmra.mxu0 %v603
          %v652 = vpop.f32.mrf.mxu0
          %v653 = vadd.f32 0.0, %v652
          %v654 = vpop.f32.mrf.mxu0
          %v655 = vadd.f32 0.0, %v654
          %656 = vmatmul.bf16.gmra.mxu0 %v606
          %v657 = vpop.f32.mrf.mxu0
          %v658 = vadd.f32 0.0, %v657
          %v659 = vpop.f32.mrf.mxu0
          %v660 = vadd.f32 0.0, %v659
          %661 = vmatmul.bf16.gmra.mxu0 %v609
          %v662 = vpop.f32.mrf.mxu0
          %v663 = vadd.f32 0.0, %v662
          %v664 = vpop.f32.mrf.mxu0
          %v665 = vadd.f32 0.0, %v664
          %666 = vmatmul.bf16.gmra.mxu0 %v612
          %v667 = vpop.f32.mrf.mxu0
          %v668 = vadd.f32 0.0, %v667
          %v669 = vpop.f32.mrf.mxu0
          %v670 = vadd.f32 0.0, %v669
          %671 = vdwg.mxu0
          %672 = vmatpush.bf16.msra.mxu0 0
          %673 = vmatpush.bf16.msra.mxu0 0
          %674 = vmatpush.bf16.msra.mxu0 0
          %675 = vmatpush.bf16.msra.mxu0 0
          %676 = vmatpush.bf16.msra.mxu0 0
          %677 = vmatpush.bf16.msra.mxu0 0
          %678 = vmatpush.bf16.msra.mxu0 0
          %679 = vmatpush.bf16.msra.mxu0 %v579
          %680 = vmatmul.bf16.gmra.mxu0 %v603
          %v681 = vpop.f32.mrf.mxu0
          %v682 = vadd.f32 0.0, %v681
          %v683 = vpop.f32.mrf.mxu0
          %v684 = vadd.f32 0.0, %v683
          %685 = vmatmul.bf16.gmra.mxu0 %v606
          %v686 = vpop.f32.mrf.mxu0
          %v687 = vadd.f32 0.0, %v686
          %v688 = vpop.f32.mrf.mxu0
          %v689 = vadd.f32 0.0, %v688
          %690 = vmatmul.bf16.gmra.mxu0 %v609
          %v691 = vpop.f32.mrf.mxu0
          %v692 = vadd.f32 0.0, %v691
          %v693 = vpop.f32.mrf.mxu0
          %v694 = vadd.f32 0.0, %v693
          %695 = vmatmul.bf16.gmra.mxu0 %v612
          %v696 = vpop.f32.mrf.mxu0
          %v697 = vadd.f32 0.0, %v696
          %v698 = vpop.f32.mrf.mxu0
          %v699 = vadd.f32 0.0, %v698
          %700 = vdwg.mxu0
          %701 = vmatpush.bf16.msra.mxu0 0
          %702 = vmatpush.bf16.msra.mxu0 0
          %703 = vmatpush.bf16.msra.mxu0 0
          %704 = vmatpush.bf16.msra.mxu0 0
          %705 = vmatpush.bf16.msra.mxu0 0
          %706 = vmatpush.bf16.msra.mxu0 0
          %707 = vmatpush.bf16.msra.mxu0 0
          %708 = vmatpush.bf16.msra.mxu0 %v580
          %709 = vmatmul.bf16.gmra.mxu0 %v603
          %v710 = vpop.f32.mrf.mxu0
          %v711 = vadd.f32 0.0, %v710
          %v712 = vpop.f32.mrf.mxu0
          %v713 = vadd.f32 0.0, %v712
          %714 = vmatmul.bf16.gmra.mxu0 %v606
          %v715 = vpop.f32.mrf.mxu0
          %v716 = vadd.f32 0.0, %v715
          %v717 = vpop.f32.mrf.mxu0
          %v718 = vadd.f32 0.0, %v717
          %719 = vmatmul.bf16.gmra.mxu0 %v609
          %v720 = vpop.f32.mrf.mxu0
          %v721 = vadd.f32 0.0, %v720
          %v722 = vpop.f32.mrf.mxu0
          %v723 = vadd.f32 0.0, %v722
          %724 = vmatmul.bf16.gmra.mxu0 %v612
          %v725 = vpop.f32.mrf.mxu0
          %v726 = vadd.f32 0.0, %v725
          %v727 = vpop.f32.mrf.mxu0
          %v728 = vadd.f32 0.0, %v727
          %729 = vdwg.mxu0
          %v730 = vpack.c.bf16 %v653, %v624
          %v731 = vpack.c.bf16 %v711, %v682
          %v732 = vpack.c.bf16 %v655, %v626
          %v733 = vpack.c.bf16 %v713, %v684
          %v734 = vpack.c.bf16 %v658, %v629
          %v735 = vpack.c.bf16 %v716, %v687
          %v736 = vpack.c.bf16 %v660, %v631
          %v737 = vpack.c.bf16 %v718, %v689
          %v738 = vpack.c.bf16 %v663, %v634
          %v739 = vpack.c.bf16 %v721, %v692
          %v740 = vpack.c.bf16 %v665, %v636
          %v741 = vpack.c.bf16 %v723, %v694
          %v742 = vpack.c.bf16 %v668, %v639
          %v743 = vpack.c.bf16 %v726, %v697
          %v744 = vpack.c.bf16 %v670, %v641
          %v745 = vpack.c.bf16 %v728, %v699
          %747 = vset.pattern.permute.xlu0 0
          %748 = vperm.xlu0 %747, %v403
          %v749 = vpop.permute.xlu0 %748
          %v752 = vunpack.c.l.s4 839922192
          %v753 = vunpack.c.0.s8 %v752
          %v754 = vperm.slane %v749, %v753
          %756 = vset.pattern.permute.xlu0 0
          %757 = vperm.xlu0 %756, %v404
          %v758 = vpop.permute.xlu0 %757
          %v761 = vunpack.c.l.s4 839922192
          %v762 = vunpack.c.0.s8 %v761
          %v763 = vperm.slane %v758, %v762
          %765 = vset.pattern.permute.xlu0 0
          %766 = vperm.xlu0 %765, %v405
          %v767 = vpop.permute.xlu0 %766
          %v770 = vunpack.c.l.s4 839922192
          %v771 = vunpack.c.0.s8 %v770
          %v772 = vperm.slane %v767, %v771
          %774 = vset.pattern.permute.xlu0 0
          %775 = vperm.xlu0 %774, %v406
          %v776 = vpop.permute.xlu0 %775
          %v779 = vunpack.c.l.s4 839922192
          %v780 = vunpack.c.0.s8 %v779
          %v781 = vperm.slane %v776, %v780
          %783 = vset.pattern.permute.xlu0 0
          %784 = vperm.xlu0 %783, %v407
          %v785 = vpop.permute.xlu0 %784
          %v788 = vunpack.c.l.s4 839922192
          %v789 = vunpack.c.0.s8 %v788
          %v790 = vperm.slane %v785, %v789
          %792 = vset.pattern.permute.xlu0 0
          %793 = vperm.xlu0 %792, %v408
          %v794 = vpop.permute.xlu0 %793
          %v797 = vunpack.c.l.s4 839922192
          %v798 = vunpack.c.0.s8 %v797
          %v799 = vperm.slane %v794, %v798
          %801 = vset.pattern.permute.xlu0 0
          %802 = vperm.xlu0 %801, %v409
          %v803 = vpop.permute.xlu0 %802
          %v806 = vunpack.c.l.s4 839922192
          %v807 = vunpack.c.0.s8 %v806
          %v808 = vperm.slane %v803, %v807
          %810 = vset.pattern.permute.xlu0 0
          %811 = vperm.xlu0 %810, %v410
          %v812 = vpop.permute.xlu0 %811
          %v815 = vunpack.c.l.s4 839922192
          %v816 = vunpack.c.0.s8 %v815
          %v817 = vperm.slane %v812, %v816
          %v818 = vunpack.c.l.bf16 %v730
          %v819 = vunpack.c.h.bf16 %v730
          %v820 = vunpack.c.l.bf16 %v731
          %v821 = vunpack.c.h.bf16 %v731
          %v822 = vunpack.c.l.bf16 %v732
          %v823 = vunpack.c.h.bf16 %v732
          %v824 = vunpack.c.l.bf16 %v733
          %v825 = vunpack.c.h.bf16 %v733
          %v826 = vunpack.c.l.bf16 %v734
          %v827 = vunpack.c.h.bf16 %v734
          %v828 = vunpack.c.l.bf16 %v735
          %v829 = vunpack.c.h.bf16 %v735
          %v830 = vunpack.c.l.bf16 %v736
          %v831 = vunpack.c.h.bf16 %v736
          %v832 = vunpack.c.l.bf16 %v737
          %v833 = vunpack.c.h.bf16 %v737
          %v834 = vunpack.c.l.bf16 %v738
          %v835 = vunpack.c.h.bf16 %v738
          %v836 = vunpack.c.l.bf16 %v739
          %v837 = vunpack.c.h.bf16 %v739
          %v838 = vunpack.c.l.bf16 %v740
          %v839 = vunpack.c.h.bf16 %v740
          %v840 = vunpack.c.l.bf16 %v741
          %v841 = vunpack.c.h.bf16 %v741
          %v842 = vunpack.c.l.bf16 %v742
          %v843 = vunpack.c.h.bf16 %v742
          %v844 = vunpack.c.l.bf16 %v743
          %v845 = vunpack.c.h.bf16 %v743
          %v846 = vunpack.c.l.bf16 %v744
          %v847 = vunpack.c.h.bf16 %v744
          %v848 = vunpack.c.l.bf16 %v745
          %v849 = vunpack.c.h.bf16 %v745
          %v850 = vunpack.c.l.bf16 %v754
          %v851 = vunpack.c.l.bf16 %v763
          %v852 = vunpack.c.l.bf16 %v772
          %v853 = vunpack.c.l.bf16 %v781
          %v854 = vunpack.c.l.bf16 %v790
          %v855 = vunpack.c.l.bf16 %v799
          %v856 = vunpack.c.l.bf16 %v808
          %v857 = vunpack.c.l.bf16 %v817
          %v858 = vadd.f32 %v818, %v850
          %v859 = vadd.f32 %v819, %v850
          %v860 = vadd.f32 %v820, %v850
          %v861 = vadd.f32 %v821, %v850
          %v862 = vadd.f32 %v822, %v851
          %v863 = vadd.f32 %v823, %v851
          %v864 = vadd.f32 %v824, %v851
          %v865 = vadd.f32 %v825, %v851
          %v866 = vadd.f32 %v826, %v852
          %v867 = vadd.f32 %v827, %v852
          %v868 = vadd.f32 %v828, %v852
          %v869 = vadd.f32 %v829, %v852
          %v870 = vadd.f32 %v830, %v853
          %v871 = vadd.f32 %v831, %v853
          %v872 = vadd.f32 %v832, %v853
          %v873 = vadd.f32 %v833, %v853
          %v874 = vadd.f32 %v834, %v854
          %v875 = vadd.f32 %v835, %v854
          %v876 = vadd.f32 %v836, %v854
          %v877 = vadd.f32 %v837, %v854
          %v878 = vadd.f32 %v838, %v855
          %v879 = vadd.f32 %v839, %v855
          %v880 = vadd.f32 %v840, %v855
          %v881 = vadd.f32 %v841, %v855
          %v882 = vadd.f32 %v842, %v856
          %v883 = vadd.f32 %v843, %v856
          %v884 = vadd.f32 %v844, %v856
          %v885 = vadd.f32 %v845, %v856
          %v886 = vadd.f32 %v846, %v857
          %v887 = vadd.f32 %v847, %v857
          %v888 = vadd.f32 %v848, %v857
          %v889 = vadd.f32 %v849, %v857
          %v890 = vpack.c.bf16 %v859, %v858
          %v891 = vpack.c.bf16 %v861, %v860
          %v892 = vpack.c.bf16 %v863, %v862
          %v893 = vpack.c.bf16 %v865, %v864
          %v894 = vpack.c.bf16 %v867, %v866
          %v895 = vpack.c.bf16 %v869, %v868
          %v896 = vpack.c.bf16 %v871, %v870
          %v897 = vpack.c.bf16 %v873, %v872
          %v898 = vpack.c.bf16 %v875, %v874
          %v899 = vpack.c.bf16 %v877, %v876
          %v900 = vpack.c.bf16 %v879, %v878
          %v901 = vpack.c.bf16 %v881, %v880
          %v902 = vpack.c.bf16 %v883, %v882
          %v903 = vpack.c.bf16 %v885, %v884
          %v904 = vpack.c.bf16 %v887, %v886
          %v905 = vpack.c.bf16 %v889, %v888
          %v906 = vunpack.c.l.bf16 %v890
          %v907 = vunpack.c.h.bf16 %v890
          %v908 = vunpack.c.l.bf16 %v891
          %v909 = vunpack.c.h.bf16 %v891
          %v910 = vunpack.c.l.bf16 %v892
          %v911 = vunpack.c.h.bf16 %v892
          %v912 = vunpack.c.l.bf16 %v893
          %v913 = vunpack.c.h.bf16 %v893
          %v914 = vunpack.c.l.bf16 %v894
          %v915 = vunpack.c.h.bf16 %v894
          %v916 = vunpack.c.l.bf16 %v895
          %v917 = vunpack.c.h.bf16 %v895
          %v918 = vunpack.c.l.bf16 %v896
          %v919 = vunpack.c.h.bf16 %v896
          %v920 = vunpack.c.l.bf16 %v897
          %v921 = vunpack.c.h.bf16 %v897
          %v922 = vunpack.c.l.bf16 %v898
          %v923 = vunpack.c.h.bf16 %v898
          %v924 = vunpack.c.l.bf16 %v899
          %v925 = vunpack.c.h.bf16 %v899
          %v926 = vunpack.c.l.bf16 %v900
          %v927 = vunpack.c.h.bf16 %v900
          %v928 = vunpack.c.l.bf16 %v901
          %v929 = vunpack.c.h.bf16 %v901
          %v930 = vunpack.c.l.bf16 %v902
          %v931 = vunpack.c.h.bf16 %v902
          %v932 = vunpack.c.l.bf16 %v903
          %v933 = vunpack.c.h.bf16 %v903
          %v934 = vunpack.c.l.bf16 %v904
          %v935 = vunpack.c.h.bf16 %v904
          %v936 = vunpack.c.l.bf16 %v905
          %v937 = vunpack.c.h.bf16 %v905
          %v938 = vmax.f32 %v906, 0.0
          %v939 = vmax.f32 %v907, 0.0
          %v940 = vmax.f32 %v908, 0.0
          %v941 = vmax.f32 %v909, 0.0
          %v942 = vmax.f32 %v910, 0.0
          %v943 = vmax.f32 %v911, 0.0
          %v944 = vmax.f32 %v912, 0.0
          %v945 = vmax.f32 %v913, 0.0
          %v946 = vmax.f32 %v914, 0.0
          %v947 = vmax.f32 %v915, 0.0
          %v948 = vmax.f32 %v916, 0.0
          %v949 = vmax.f32 %v917, 0.0
          %v950 = vmax.f32 %v918, 0.0
          %v951 = vmax.f32 %v919, 0.0
          %v952 = vmax.f32 %v920, 0.0
          %v953 = vmax.f32 %v921, 0.0
          %v954 = vmax.f32 %v922, 0.0
          %v955 = vmax.f32 %v923, 0.0
          %v956 = vmax.f32 %v924, 0.0
          %v957 = vmax.f32 %v925, 0.0
          %v958 = vmax.f32 %v926, 0.0
          %v959 = vmax.f32 %v927, 0.0
          %v960 = vmax.f32 %v928, 0.0
          %v961 = vmax.f32 %v929, 0.0
          %v962 = vmax.f32 %v930, 0.0
          %v963 = vmax.f32 %v931, 0.0
          %v964 = vmax.f32 %v932, 0.0
          %v965 = vmax.f32 %v933, 0.0
          %v966 = vmax.f32 %v934, 0.0
          %v967 = vmax.f32 %v935, 0.0
          %v968 = vmax.f32 %v936, 0.0
          %v969 = vmax.f32 %v937, 0.0
          %v970 = vpack.c.bf16 %v942, %v938
          %v971 = vpack.c.bf16 %v943, %v939
          %v972 = vpack.c.bf16 %v944, %v940
          %v973 = vpack.c.bf16 %v945, %v941
          %v974 = vpack.c.bf16 %v950, %v946
          %v975 = vpack.c.bf16 %v951, %v947
          %v976 = vpack.c.bf16 %v952, %v948
          %v977 = vpack.c.bf16 %v953, %v949
          %v978 = vpack.c.bf16 %v958, %v954
          %v979 = vpack.c.bf16 %v959, %v955
          %v980 = vpack.c.bf16 %v960, %v956
          %v981 = vpack.c.bf16 %v961, %v957
          %v982 = vpack.c.bf16 %v966, %v962
          %v983 = vpack.c.bf16 %v967, %v963
          %v984 = vpack.c.bf16 %v968, %v964
          %v985 = vpack.c.bf16 %v969, %v965
          %v994 = vunpack.c.l.b16 %v411
          %v995 = vunpack.c.l.b16 %v412
          %v996 = vunpack.c.l.b16 %v413
          %v997 = vunpack.c.l.b16 %v414
          %v998 = vunpack.c.l.b16 %v415
          %v999 = vunpack.c.l.b16 %v416
          %v1000 = vunpack.c.l.b16 %v417
          %v1001 = vunpack.c.l.b16 %v418
          %v1002 = vpack.c.b16 %v995, %v994
          %v1003 = vpack.c.b16 %v997, %v996
          %v1004 = vpack.c.b16 %v999, %v998
          %v1005 = vpack.c.b16 %v1001, %v1000
          %vm1006 = vcmask 523264
          %v1008 = vsel %vm1006, %v1002, 0
          %v1011 = vsel %vm1006, %v1003, 0
          %v1014 = vsel %vm1006, %v1004, 0
          %v1017 = vsel %vm1006, %v1005, 0
          %1019 = vmatpush.bf16.msra.mxu0 0
          %1020 = vmatpush.bf16.msra.mxu0 0
          %1021 = vmatpush.bf16.msra.mxu0 0
          %1022 = vmatpush.bf16.msra.mxu0 0
          %1023 = vmatpush.bf16.msra.mxu0 %v982
          %1024 = vmatpush.bf16.msra.mxu0 %v978
          %1025 = vmatpush.bf16.msra.mxu0 %v974
          %1026 = vmatpush.bf16.msra.mxu0 %v970
          %1027 = vmatmul.bf16.gmra.mxu0 %v1008
          %v1028 = vpop.f32.mrf.mxu0
          %v1029 = vadd.f32 0.0, %v1028
          %v1030 = vpop.f32.mrf.mxu0
          %v1031 = vadd.f32 0.0, %v1030
          %1032 = vmatmul.bf16.gmra.mxu0 %v1011
          %v1033 = vpop.f32.mrf.mxu0
          %v1034 = vadd.f32 0.0, %v1033
          %v1035 = vpop.f32.mrf.mxu0
          %v1036 = vadd.f32 0.0, %v1035
          %1037 = vmatmul.bf16.gmra.mxu0 %v1014
          %v1038 = vpop.f32.mrf.mxu0
          %v1039 = vadd.f32 0.0, %v1038
          %v1040 = vpop.f32.mrf.mxu0
          %v1041 = vadd.f32 0.0, %v1040
          %1042 = vmatmul.bf16.gmra.mxu0 %v1017
          %v1043 = vpop.f32.mrf.mxu0
          %v1044 = vadd.f32 0.0, %v1043
          %v1045 = vpop.f32.mrf.mxu0
          %v1046 = vadd.f32 0.0, %v1045
          %1047 = vdwg.mxu0
          %1048 = vmatpush.bf16.msra.mxu0 0
          %1049 = vmatpush.bf16.msra.mxu0 0
          %1050 = vmatpush.bf16.msra.mxu0 0
          %1051 = vmatpush.bf16.msra.mxu0 0
          %1052 = vmatpush.bf16.msra.mxu0 %v983
          %1053 = vmatpush.bf16.msra.mxu0 %v979
          %1054 = vmatpush.bf16.msra.mxu0 %v975
          %1055 = vmatpush.bf16.msra.mxu0 %v971
          %1056 = vmatmul.bf16.gmra.mxu0 %v1008
          %v1057 = vpop.f32.mrf.mxu0
          %v1058 = vadd.f32 0.0, %v1057
          %v1059 = vpop.f32.mrf.mxu0
          %v1060 = vadd.f32 0.0, %v1059
          %1061 = vmatmul.bf16.gmra.mxu0 %v1011
          %v1062 = vpop.f32.mrf.mxu0
          %v1063 = vadd.f32 0.0, %v1062
          %v1064 = vpop.f32.mrf.mxu0
          %v1065 = vadd.f32 0.0, %v1064
          %1066 = vmatmul.bf16.gmra.mxu0 %v1014
          %v1067 = vpop.f32.mrf.mxu0
          %v1068 = vadd.f32 0.0, %v1067
          %v1069 = vpop.f32.mrf.mxu0
          %v1070 = vadd.f32 0.0, %v1069
          %1071 = vmatmul.bf16.gmra.mxu0 %v1017
          %v1072 = vpop.f32.mrf.mxu0
          %v1073 = vadd.f32 0.0, %v1072
          %v1074 = vpop.f32.mrf.mxu0
          %v1075 = vadd.f32 0.0, %v1074
          %1076 = vdwg.mxu0
          %1077 = vmatpush.bf16.msra.mxu0 0
          %1078 = vmatpush.bf16.msra.mxu0 0
          %1079 = vmatpush.bf16.msra.mxu0 0
          %1080 = vmatpush.bf16.msra.mxu0 0
          %1081 = vmatpush.bf16.msra.mxu0 %v984
          %1082 = vmatpush.bf16.msra.mxu0 %v980
          %1083 = vmatpush.bf16.msra.mxu0 %v976
          %1084 = vmatpush.bf16.msra.mxu0 %v972
          %1085 = vmatmul.bf16.gmra.mxu0 %v1008
          %v1086 = vpop.f32.mrf.mxu0
          %v1087 = vadd.f32 0.0, %v1086
          %v1088 = vpop.f32.mrf.mxu0
          %v1089 = vadd.f32 0.0, %v1088
          %1090 = vmatmul.bf16.gmra.mxu0 %v1011
          %v1091 = vpop.f32.mrf.mxu0
          %v1092 = vadd.f32 0.0, %v1091
          %v1093 = vpop.f32.mrf.mxu0
          %v1094 = vadd.f32 0.0, %v1093
          %1095 = vmatmul.bf16.gmra.mxu0 %v1014
          %v1096 = vpop.f32.mrf.mxu0
          %v1097 = vadd.f32 0.0, %v1096
          %v1098 = vpop.f32.mrf.mxu0
          %v1099 = vadd.f32 0.0, %v1098
          %1100 = vmatmul.bf16.gmra.mxu0 %v1017
          %v1101 = vpop.f32.mrf.mxu0
          %v1102 = vadd.f32 0.0, %v1101
          %v1103 = vpop.f32.mrf.mxu0
          %v1104 = vadd.f32 0.0, %v1103
          %1105 = vdwg.mxu0
          %1106 = vmatpush.bf16.msra.mxu0 0
          %1107 = vmatpush.bf16.msra.mxu0 0
          %1108 = vmatpush.bf16.msra.mxu0 0
          %1109 = vmatpush.bf16.msra.mxu0 0
          %1110 = vmatpush.bf16.msra.mxu0 %v985
          %1111 = vmatpush.bf16.msra.mxu0 %v981
          %1112 = vmatpush.bf16.msra.mxu0 %v977
          %1113 = vmatpush.bf16.msra.mxu0 %v973
          %1114 = vmatmul.bf16.gmra.mxu0 %v1008
          %v1115 = vpop.f32.mrf.mxu0
          %v1116 = vadd.f32 0.0, %v1115
          %v1117 = vpop.f32.mrf.mxu0
          %v1118 = vadd.f32 0.0, %v1117
          %1119 = vmatmul.bf16.gmra.mxu0 %v1011
          %v1120 = vpop.f32.mrf.mxu0
          %v1121 = vadd.f32 0.0, %v1120
          %v1122 = vpop.f32.mrf.mxu0
          %v1123 = vadd.f32 0.0, %v1122
          %1124 = vmatmul.bf16.gmra.mxu0 %v1014
          %v1125 = vpop.f32.mrf.mxu0
          %v1126 = vadd.f32 0.0, %v1125
          %v1127 = vpop.f32.mrf.mxu0
          %v1128 = vadd.f32 0.0, %v1127
          %1129 = vmatmul.bf16.gmra.mxu0 %v1017
          %v1130 = vpop.f32.mrf.mxu0
          %v1131 = vadd.f32 0.0, %v1130
          %v1132 = vpop.f32.mrf.mxu0
          %v1133 = vadd.f32 0.0, %v1132
          %1134 = vdwg.mxu0
          %v1135 = vpack.c.bf16 %v1058, %v1029
          %v1136 = vpack.c.bf16 %v1116, %v1087
          %v1137 = vpack.c.bf16 %v1060, %v1031
          %v1138 = vpack.c.bf16 %v1118, %v1089
          %v1139 = vpack.c.bf16 %v1063, %v1034
          %v1140 = vpack.c.bf16 %v1121, %v1092
          %v1141 = vpack.c.bf16 %v1065, %v1036
          %v1142 = vpack.c.bf16 %v1123, %v1094
          %v1143 = vpack.c.bf16 %v1068, %v1039
          %v1144 = vpack.c.bf16 %v1126, %v1097
          %v1145 = vpack.c.bf16 %v1070, %v1041
          %v1146 = vpack.c.bf16 %v1128, %v1099
          %v1147 = vpack.c.bf16 %v1073, %v1044
          %v1148 = vpack.c.bf16 %v1131, %v1102
          %v1149 = vpack.c.bf16 %v1075, %v1046
          %v1150 = vpack.c.bf16 %v1133, %v1104
          %1152 = vset.pattern.permute.xlu0 0
          %1153 = vperm.xlu0 %1152, %v419
          %v1154 = vpop.permute.xlu0 %1153
          %v1157 = vunpack.c.l.s4 839922192
          %v1158 = vunpack.c.0.s8 %v1157
          %v1159 = vperm.slane %v1154, %v1158
          %1161 = vset.pattern.permute.xlu0 0
          %1162 = vperm.xlu0 %1161, %v420
          %v1163 = vpop.permute.xlu0 %1162
          %v1166 = vunpack.c.l.s4 839922192
          %v1167 = vunpack.c.0.s8 %v1166
          %v1168 = vperm.slane %v1163, %v1167
          %1170 = vset.pattern.permute.xlu0 0
          %1171 = vperm.xlu0 %1170, %v421
          %v1172 = vpop.permute.xlu0 %1171
          %v1175 = vunpack.c.l.s4 839922192
          %v1176 = vunpack.c.0.s8 %v1175
          %v1177 = vperm.slane %v1172, %v1176
          %1179 = vset.pattern.permute.xlu0 0
          %1180 = vperm.xlu0 %1179, %v422
          %v1181 = vpop.permute.xlu0 %1180
          %v1184 = vunpack.c.l.s4 839922192
          %v1185 = vunpack.c.0.s8 %v1184
          %v1186 = vperm.slane %v1181, %v1185
          %1188 = vset.pattern.permute.xlu0 0
          %1189 = vperm.xlu0 %1188, %v423
          %v1190 = vpop.permute.xlu0 %1189
          %v1193 = vunpack.c.l.s4 839922192
          %v1194 = vunpack.c.0.s8 %v1193
          %v1195 = vperm.slane %v1190, %v1194
          %1197 = vset.pattern.permute.xlu0 0
          %1198 = vperm.xlu0 %1197, %v424
          %v1199 = vpop.permute.xlu0 %1198
          %v1202 = vunpack.c.l.s4 839922192
          %v1203 = vunpack.c.0.s8 %v1202
          %v1204 = vperm.slane %v1199, %v1203
          %1206 = vset.pattern.permute.xlu0 0
          %1207 = vperm.xlu0 %1206, %v425
          %v1208 = vpop.permute.xlu0 %1207
          %v1211 = vunpack.c.l.s4 839922192
          %v1212 = vunpack.c.0.s8 %v1211
          %v1213 = vperm.slane %v1208, %v1212
          %1215 = vset.pattern.permute.xlu0 0
          %1216 = vperm.xlu0 %1215, %v426
          %v1217 = vpop.permute.xlu0 %1216
          %v1220 = vunpack.c.l.s4 839922192
          %v1221 = vunpack.c.0.s8 %v1220
          %v1222 = vperm.slane %v1217, %v1221
          %v1223 = vunpack.c.l.bf16 %v1135
          %v1224 = vunpack.c.h.bf16 %v1135
          %v1225 = vunpack.c.l.bf16 %v1136
          %v1226 = vunpack.c.h.bf16 %v1136
          %v1227 = vunpack.c.l.bf16 %v1137
          %v1228 = vunpack.c.h.bf16 %v1137
          %v1229 = vunpack.c.l.bf16 %v1138
          %v1230 = vunpack.c.h.bf16 %v1138
          %v1231 = vunpack.c.l.bf16 %v1139
          %v1232 = vunpack.c.h.bf16 %v1139
          %v1233 = vunpack.c.l.bf16 %v1140
          %v1234 = vunpack.c.h.bf16 %v1140
          %v1235 = vunpack.c.l.bf16 %v1141
          %v1236 = vunpack.c.h.bf16 %v1141
          %v1237 = vunpack.c.l.bf16 %v1142
          %v1238 = vunpack.c.h.bf16 %v1142
          %v1239 = vunpack.c.l.bf16 %v1143
          %v1240 = vunpack.c.h.bf16 %v1143
          %v1241 = vunpack.c.l.bf16 %v1144
          %v1242 = vunpack.c.h.bf16 %v1144
          %v1243 = vunpack.c.l.bf16 %v1145
          %v1244 = vunpack.c.h.bf16 %v1145
          %v1245 = vunpack.c.l.bf16 %v1146
          %v1246 = vunpack.c.h.bf16 %v1146
          %v1247 = vunpack.c.l.bf16 %v1147
          %v1248 = vunpack.c.h.bf16 %v1147
          %v1249 = vunpack.c.l.bf16 %v1148
          %v1250 = vunpack.c.h.bf16 %v1148
          %v1251 = vunpack.c.l.bf16 %v1149
          %v1252 = vunpack.c.h.bf16 %v1149
          %v1253 = vunpack.c.l.bf16 %v1150
          %v1254 = vunpack.c.h.bf16 %v1150
          %v1255 = vunpack.c.l.bf16 %v1159
          %v1256 = vunpack.c.l.bf16 %v1168
          %v1257 = vunpack.c.l.bf16 %v1177
          %v1258 = vunpack.c.l.bf16 %v1186
          %v1259 = vunpack.c.l.bf16 %v1195
          %v1260 = vunpack.c.l.bf16 %v1204
          %v1261 = vunpack.c.l.bf16 %v1213
          %v1262 = vunpack.c.l.bf16 %v1222
          %v1263 = vadd.f32 %v1223, %v1255
          %v1264 = vadd.f32 %v1224, %v1255
          %v1265 = vadd.f32 %v1225, %v1255
          %v1266 = vadd.f32 %v1226, %v1255
          %v1267 = vadd.f32 %v1227, %v1256
          %v1268 = vadd.f32 %v1228, %v1256
          %v1269 = vadd.f32 %v1229, %v1256
          %v1270 = vadd.f32 %v1230, %v1256
          %v1271 = vadd.f32 %v1231, %v1257
          %v1272 = vadd.f32 %v1232, %v1257
          %v1273 = vadd.f32 %v1233, %v1257
          %v1274 = vadd.f32 %v1234, %v1257
          %v1275 = vadd.f32 %v1235, %v1258
          %v1276 = vadd.f32 %v1236, %v1258
          %v1277 = vadd.f32 %v1237, %v1258
          %v1278 = vadd.f32 %v1238, %v1258
          %v1279 = vadd.f32 %v1239, %v1259
          %v1280 = vadd.f32 %v1240, %v1259
          %v1281 = vadd.f32 %v1241, %v1259
          %v1282 = vadd.f32 %v1242, %v1259
          %v1283 = vadd.f32 %v1243, %v1260
          %v1284 = vadd.f32 %v1244, %v1260
          %v1285 = vadd.f32 %v1245, %v1260
          %v1286 = vadd.f32 %v1246, %v1260
          %v1287 = vadd.f32 %v1247, %v1261
          %v1288 = vadd.f32 %v1248, %v1261
          %v1289 = vadd.f32 %v1249, %v1261
          %v1290 = vadd.f32 %v1250, %v1261
          %v1291 = vadd.f32 %v1251, %v1262
          %v1292 = vadd.f32 %v1252, %v1262
          %v1293 = vadd.f32 %v1253, %v1262
          %v1294 = vadd.f32 %v1254, %v1262
          %v1295 = vpack.c.bf16 %v1264, %v1263
          %v1296 = vpack.c.bf16 %v1266, %v1265
          %v1297 = vpack.c.bf16 %v1268, %v1267
          %v1298 = vpack.c.bf16 %v1270, %v1269
          %v1299 = vpack.c.bf16 %v1272, %v1271
          %v1300 = vpack.c.bf16 %v1274, %v1273
          %v1301 = vpack.c.bf16 %v1276, %v1275
          %v1302 = vpack.c.bf16 %v1278, %v1277
          %v1303 = vpack.c.bf16 %v1280, %v1279
          %v1304 = vpack.c.bf16 %v1282, %v1281
          %v1305 = vpack.c.bf16 %v1284, %v1283
          %v1306 = vpack.c.bf16 %v1286, %v1285
          %v1307 = vpack.c.bf16 %v1288, %v1287
          %v1308 = vpack.c.bf16 %v1290, %v1289
          %v1309 = vpack.c.bf16 %v1292, %v1291
          %v1310 = vpack.c.bf16 %v1294, %v1293
          %v1311 = vunpack.c.l.bf16 %v1295
          %v1312 = vunpack.c.h.bf16 %v1295
          %v1313 = vunpack.c.l.bf16 %v1296
          %v1314 = vunpack.c.h.bf16 %v1296
          %v1315 = vunpack.c.l.bf16 %v1297
          %v1316 = vunpack.c.h.bf16 %v1297
          %v1317 = vunpack.c.l.bf16 %v1298
          %v1318 = vunpack.c.h.bf16 %v1298
          %v1319 = vunpack.c.l.bf16 %v1299
          %v1320 = vunpack.c.h.bf16 %v1299
          %v1321 = vunpack.c.l.bf16 %v1300
          %v1322 = vunpack.c.h.bf16 %v1300
          %v1323 = vunpack.c.l.bf16 %v1301
          %v1324 = vunpack.c.h.bf16 %v1301
          %v1325 = vunpack.c.l.bf16 %v1302
          %v1326 = vunpack.c.h.bf16 %v1302
          %v1327 = vunpack.c.l.bf16 %v1303
          %v1328 = vunpack.c.h.bf16 %v1303
          %v1329 = vunpack.c.l.bf16 %v1304
          %v1330 = vunpack.c.h.bf16 %v1304
          %v1331 = vunpack.c.l.bf16 %v1305
          %v1332 = vunpack.c.h.bf16 %v1305
          %v1333 = vunpack.c.l.bf16 %v1306
          %v1334 = vunpack.c.h.bf16 %v1306
          %v1335 = vunpack.c.l.bf16 %v1307
          %v1336 = vunpack.c.h.bf16 %v1307
          %v1337 = vunpack.c.l.bf16 %v1308
          %v1338 = vunpack.c.h.bf16 %v1308
          %v1339 = vunpack.c.l.bf16 %v1309
          %v1340 = vunpack.c.h.bf16 %v1309
          %v1341 = vunpack.c.l.bf16 %v1310
          %v1342 = vunpack.c.h.bf16 %v1310
          %v1343 = vmax.f32 %v1311, 0.0
          %v1344 = vmax.f32 %v1312, 0.0
          %v1345 = vmax.f32 %v1313, 0.0
          %v1346 = vmax.f32 %v1314, 0.0
          %v1347 = vmax.f32 %v1315, 0.0
          %v1348 = vmax.f32 %v1316, 0.0
          %v1349 = vmax.f32 %v1317, 0.0
          %v1350 = vmax.f32 %v1318, 0.0
          %v1351 = vmax.f32 %v1319, 0.0
          %v1352 = vmax.f32 %v1320, 0.0
          %v1353 = vmax.f32 %v1321, 0.0
          %v1354 = vmax.f32 %v1322, 0.0
          %v1355 = vmax.f32 %v1323, 0.0
          %v1356 = vmax.f32 %v1324, 0.0
          %v1357 = vmax.f32 %v1325, 0.0
          %v1358 = vmax.f32 %v1326, 0.0
          %v1359 = vmax.f32 %v1327, 0.0
          %v1360 = vmax.f32 %v1328, 0.0
          %v1361 = vmax.f32 %v1329, 0.0
          %v1362 = vmax.f32 %v1330, 0.0
          %v1363 = vmax.f32 %v1331, 0.0
          %v1364 = vmax.f32 %v1332, 0.0
          %v1365 = vmax.f32 %v1333, 0.0
          %v1366 = vmax.f32 %v1334, 0.0
          %v1367 = vmax.f32 %v1335, 0.0
          %v1368 = vmax.f32 %v1336, 0.0
          %v1369 = vmax.f32 %v1337, 0.0
          %v1370 = vmax.f32 %v1338, 0.0
          %v1371 = vmax.f32 %v1339, 0.0
          %v1372 = vmax.f32 %v1340, 0.0
          %v1373 = vmax.f32 %v1341, 0.0
          %v1374 = vmax.f32 %v1342, 0.0
          %v1375 = vpack.c.bf16 %v1347, %v1343
          %v1376 = vpack.c.bf16 %v1348, %v1344
          %v1377 = vpack.c.bf16 %v1349, %v1345
          %v1378 = vpack.c.bf16 %v1350, %v1346
          %v1379 = vpack.c.bf16 %v1355, %v1351
          %v1380 = vpack.c.bf16 %v1356, %v1352
          %v1381 = vpack.c.bf16 %v1357, %v1353
          %v1382 = vpack.c.bf16 %v1358, %v1354
          %v1383 = vpack.c.bf16 %v1363, %v1359
          %v1384 = vpack.c.bf16 %v1364, %v1360
          %v1385 = vpack.c.bf16 %v1365, %v1361
          %v1386 = vpack.c.bf16 %v1366, %v1362
          %v1387 = vpack.c.bf16 %v1371, %v1367
          %v1388 = vpack.c.bf16 %v1372, %v1368
          %v1389 = vpack.c.bf16 %v1373, %v1369
          %v1390 = vpack.c.bf16 %v1374, %v1370
          %1392 = vset.pattern.permute.xlu0 0
          %1393 = vperm.xlu0 %1392, %v429
          %v1394 = vpop.permute.xlu0 %1393
          %1397 = vset.pattern.permute.xlu0 0
          %1398 = vperm.xlu0 %1397, %v430
          %v1399 = vpop.permute.xlu0 %1398
          %v1403 = vunpack.c.l.b16 %v427
          %v1404 = vunpack.c.l.b16 %v428
          %v1405 = vpack.c.b16 %v1404, %v1403
          %v1407 = vsel %vm1006, %v1405, 0
          %1409 = vmatpush.bf16.msra.mxu0 0
          %1410 = vmatpush.bf16.msra.mxu0 0
          %1411 = vmatpush.bf16.msra.mxu0 0
          %1412 = vmatpush.bf16.msra.mxu0 0
          %1413 = vmatpush.bf16.msra.mxu0 %v1387
          %1414 = vmatpush.bf16.msra.mxu0 %v1383
          %1415 = vmatpush.bf16.msra.mxu0 %v1379
          %1416 = vmatpush.bf16.msra.mxu0 %v1375
          %1417 = vmatmul.bf16.gmra.mxu0 %v1407
          %v1418 = vpop.f32.mrf.mxu0
          %v1419 = vadd.f32 %v1394, %v1418
          %v1420 = vpop.f32.mrf.mxu0
          %v1421 = vadd.f32 %v1399, %v1420
          %1422 = vdwg.mxu0
          %1423 = vmatpush.bf16.msra.mxu0 0
          %1424 = vmatpush.bf16.msra.mxu0 0
          %1425 = vmatpush.bf16.msra.mxu0 0
          %1426 = vmatpush.bf16.msra.mxu0 0
          %1427 = vmatpush.bf16.msra.mxu0 %v1388
          %1428 = vmatpush.bf16.msra.mxu0 %v1384
          %1429 = vmatpush.bf16.msra.mxu0 %v1380
          %1430 = vmatpush.bf16.msra.mxu0 %v1376
          %1431 = vmatmul.bf16.gmra.mxu0 %v1407
          %v1432 = vpop.f32.mrf.mxu0
          %v1433 = vadd.f32 %v1394, %v1432
          %v1434 = vpop.f32.mrf.mxu0
          %v1435 = vadd.f32 %v1399, %v1434
          %1436 = vdwg.mxu0
          %1437 = vmatpush.bf16.msra.mxu0 0
          %1438 = vmatpush.bf16.msra.mxu0 0
          %1439 = vmatpush.bf16.msra.mxu0 0
          %1440 = vmatpush.bf16.msra.mxu0 0
          %1441 = vmatpush.bf16.msra.mxu0 %v1389
          %1442 = vmatpush.bf16.msra.mxu0 %v1385
          %1443 = vmatpush.bf16.msra.mxu0 %v1381
          %1444 = vmatpush.bf16.msra.mxu0 %v1377
          %1445 = vmatmul.bf16.gmra.mxu0 %v1407
          %v1446 = vpop.f32.mrf.mxu0
          %v1447 = vadd.f32 %v1394, %v1446
          %v1448 = vpop.f32.mrf.mxu0
          %v1449 = vadd.f32 %v1399, %v1448
          %1450 = vdwg.mxu0
          %1451 = vmatpush.bf16.msra.mxu0 0
          %1452 = vmatpush.bf16.msra.mxu0 0
          %1453 = vmatpush.bf16.msra.mxu0 0
          %1454 = vmatpush.bf16.msra.mxu0 0
          %1455 = vmatpush.bf16.msra.mxu0 %v1390
          %1456 = vmatpush.bf16.msra.mxu0 %v1386
          %1457 = vmatpush.bf16.msra.mxu0 %v1382
          %1458 = vmatpush.bf16.msra.mxu0 %v1378
          %1459 = vmatmul.bf16.gmra.mxu0 %v1407
          %v1460 = vpop.f32.mrf.mxu0
          %v1461 = vadd.f32 %v1394, %v1460
          %v1462 = vpop.f32.mrf.mxu0
          %v1463 = vadd.f32 %v1399, %v1462
          %1464 = vdwg.mxu0
          %v1465 = vmax.f32 %v1419, 0.0
          %v1466 = vmax.f32 %v1433, 0.0
          %v1467 = vmax.f32 %v1447, 0.0
          %v1468 = vmax.f32 %v1461, 0.0
          %v1469 = vmax.f32 %v1421, 0.0
          %v1470 = vmax.f32 %v1435, 0.0
          %v1471 = vmax.f32 %v1449, 0.0
          %v1472 = vmax.f32 %v1463, 0.0
          %1474 = vset.pattern.permute.xlu0 0
          %1475 = vperm.xlu0 %1474, %v431
          %v1476 = vpop.permute.xlu0 %1475
          %1479 = vset.pattern.permute.xlu0 0
          %1480 = vperm.xlu0 %1479, %v432
          %v1481 = vpop.permute.xlu0 %1480
          %v1483 = vmul.f32 %v1476, %v1465
          %v1484 = vmul.f32 %v1476, %v1466
          %v1485 = vmul.f32 %v1476, %v1467
          %v1486 = vmul.f32 %v1476, %v1468
          %v1487 = vmul.f32 %v1481, %v1469
          %v1488 = vmul.f32 %v1481, %v1470
          %v1489 = vmul.f32 %v1481, %v1471
          %v1490 = vmul.f32 %v1481, %v1472
          %v1491 = vadd.f32 %v1483, %v1487
          %v1492 = vrot.slane %v1491, 4
          %v1493 = vadd.f32 %v1491, %v1492
          %v1494 = vrot.slane %v1493, 2
          %v1495 = vadd.f32 %v1493, %v1494
          %v1496 = vrot.slane %v1495, 1
          %v1497 = vadd.f32 %v1495, %v1496
          %v1498 = vadd.f32 %v1484, %v1488
          %v1499 = vrot.slane %v1498, 4
          %v1500 = vadd.f32 %v1498, %v1499
          %v1501 = vrot.slane %v1500, 2
          %v1502 = vadd.f32 %v1500, %v1501
          %v1503 = vrot.slane %v1502, 1
          %v1504 = vadd.f32 %v1502, %v1503
          %v1505 = vadd.f32 %v1485, %v1489
          %v1506 = vrot.slane %v1505, 4
          %v1507 = vadd.f32 %v1505, %v1506
          %v1508 = vrot.slane %v1507, 2
          %v1509 = vadd.f32 %v1507, %v1508
          %v1510 = vrot.slane %v1509, 1
          %v1511 = vadd.f32 %v1509, %v1510
          %v1512 = vadd.f32 %v1486, %v1490
          %v1513 = vrot.slane %v1512, 4
          %v1514 = vadd.f32 %v1512, %v1513
          %v1515 = vrot.slane %v1514, 2
          %v1516 = vadd.f32 %v1514, %v1515
          %v1517 = vrot.slane %v1516, 1
          %v1518 = vadd.f32 %v1516, %v1517
          %1520 = vset.pattern.permute.xlu0 0
          %1521 = vperm.xlu0 %1520, %v433
          %v1522 = vpop.permute.xlu0 %1521
          %v1524 = vperm.slane %v1522, 0
          %v1525 = vadd.f32 %v1497, %v1524
          %v1526 = vadd.f32 %v1504, %v1524
          %v1527 = vadd.f32 %v1511, %v1524
          %v1528 = vadd.f32 %v1518, %v1524
          %v1533 = vrot.slane %v1526, 7
          %v1534 = vrot.slane %v1527, 6
          %v1535 = vrot.slane %v1528, 5
          %vm1536 = vcmask 1040384
          %v1537 = vsel %vm1536, %v1525, %v1533
          %vm1538 = vcmask 1042434
          %v1539 = vsel %vm1538, %v1534, %v1535
          %vm1540 = vcmask 1041408
          %v1541 = vsel %vm1540, %v1537, %v1539
          %s1543 = scalar_lea.vmem %s382, %s441 [#allocation3]
          %v1544 = vlaneseq
          %vm1545 = vcmp.ge.s32.totalorder %v1544, 0
          %vm1546 = vcmp.lt.s32.totalorder %v1544, 512
          %vm1547 = vmand %vm1545, %vm1546
          %1548 = vst.msk [vmem:[%s1543] sm:$0xf] %vm1547, %v1541
        $region69: #{tpu_custom_call.1} parent=63 // loop_footer
          %s439 = sadd.s32 1, %s435
        $region70: #{tpu_custom_call.1} parent=63 // loop_footer_branch
          %434 = sbr.rel target = $region66
        $region71: #{tpu_custom_call.1} parent=63 // loop_exit
          _
        %s1549 = sand.u32 %s271, 1
        %s1550 = scalar_lea.sflag [#allocation4], %s1549
        %s1551 = sand.u32 %s271, 1
        %s1552 = smul.addr %s1551, 8
        %s1553 = scalar_lea.vmem [#allocation3], %s1552
        // Predicated region
        $region72: #{tpu_custom_call.1} parent=63 // pred_check
          %p1554 = pneg %p281
        $region73: #{tpu_custom_call.1} parent=63 // pred_check_branch
          %1556 = sbr.rel (%p1554) target = $region75
        $region74: #{tpu_custom_call.1} parent=63 // pred_region
          %s1557 = smul.u32 8, %s27
          %1559 = vsyncadd %s1550, 0
          %s1560 = scalar_lea.hbm %s11, %s1557
          %s1562 = sshll.u32 %s1553, 4
          %s1563 = int_to_ptr.vmem [resolvable:$true] %s1562
          %s1564 = sshll.u32 %s1560, 4
          %s1565 = int_to_ptr.hbm [resolvable:$true] %s1564
          %1567 = dma.vmem_to_hbm [thread:$0]  %s1563, 128, %s1565, %s1550
        $region75: #{tpu_custom_call.1} parent=63 // pred_fallthru
          _
      $region64: #{tpu_custom_call.1} parent=5 // pred_fallthru
        _
      %p1568 = scmp.le.s32.totalorder 2, %s22
      // Predicated region
      $region76: #{tpu_custom_call.1} parent=5 // pred_check
        %p1569 = pneg %p1568
      $region77: #{tpu_custom_call.1} parent=5 // pred_check_branch
        %1571 = sbr.rel (%p1569) target = $region79
      $region78: #{tpu_custom_call.1} parent=5 // pred_region
        %s1572 = ssub.s32 %s22, 2
        // Predicated region
        $region80: #{tpu_custom_call.1} parent=78 // pred_check
          %p1573 = pneg %p287
        $region81: #{tpu_custom_call.1} parent=78 // pred_check_branch
          %1575 = sbr.rel (%p1573) target = $region83
        $region82: #{tpu_custom_call.1} parent=78 // pred_region
          %s1576 = sand.u32 %s272, 1
          %s1577 = scalar_lea.sflag [#allocation4], %s1576
          %s1578 = sand.u32 %s272, 1
          %s1579 = smul.addr %s1578, 8
          %s1580 = scalar_lea.vmem [#allocation3], %s1579
          %1582 = dma.done %s1577, 128
        $region83: #{tpu_custom_call.1} parent=78 // pred_fallthru
          _
      $region79: #{tpu_custom_call.1} parent=5 // pred_fallthru
        _
    $region6: #{tpu_custom_call.1} parent=1 // loop_footer
      %s26 = sadd.s32 1, %s22
    $region7: #{tpu_custom_call.1} parent=1 // loop_footer_branch
      %21 = sbr.rel target = $region3
    $region8: #{tpu_custom_call.1} parent=1 // loop_exit
      _
    %1583 = vsyncpa [#allocation4], 1
    %s1584 = scalar_lea.sflag [#allocation4], 1
    %1585 = vsyncpa %s1584, 1

</llo_original>
